<compile_context>
chip_gen: v7x
topology: tpu7x:2x2x1
jax: 0.10.0
libtpu: 0.0.40
codegen_flags: <defaults>
</compile_context>

<pallas_src>
import numpy as np
import jax
import jax.numpy as jnp
from jax import lax
from jax.experimental import pallas as pl
from jax.experimental.pallas import tpu as pltpu

EPS = 1e-5
K = 3  # conv kernel size (3x3)


def _toeplitz_weights(w_hwio, w_in, w_out):
    """(K,K,Cin,Cout) HWIO weights -> (K, w_in*Cin, w_out*Cout).

    T[kh, wi*Cin+ci, wo*Cout+co] = w[kh, wi-wo, ci, co] for 0 <= wi-wo < K,
    so a valid KxK conv on a lane-major (rows, W*Cin) activation becomes K
    matmuls (one per kh) with sublane-offset LHS slices.
    """
    kk, _, cin, cout = w_hwio.shape
    sel = np.zeros((kk, w_in, w_out), np.float32)
    for kw in range(kk):
        for wo in range(w_out):
            sel[kw, wo + kw, wo] = 1.0
    t = jnp.einsum('qwv,kqio->kwivo', jnp.asarray(sel),
                   w_hwio.astype(jnp.float32))
    return t.reshape(kk, w_in * cin, w_out * cout)


def _make_fused_kernel(n, h, w, cin, c0, c1):
    ho0, wo0 = h - K + 1, w - K + 1
    ho1, wo1 = ho0 - K + 1, wo0 - K + 1
    r0 = (n - 1) * h + ho0            # stage-0 rows (incl. image-gap garbage rows)
    r1 = (n - 1) * h + ho1            # stage-1 rows
    l0, l1 = wo0 * c0, wo1 * c1       # lane widths (wo*C layout)
    m0 = float(n * ho0 * wo0)         # BN0 element count per channel
    m1 = float(n * ho1 * wo1)         # BN1 element count per channel

    def valid_rows(rows, lanes, ho):
        # Row r encodes (image i, output row oh) as r = i*h + oh; rows with
        # oh >= ho straddle the image boundary and are masked out of the stats.
        r = lax.broadcasted_iota(jnp.int32, (rows, lanes), 0)
        mask = r < ho
        for i in range(1, n):
            mask = mask | ((r >= i * h) & (r < i * h + ho))
        return mask

    def group_to_channel(lanes, c):
        # (lanes, c) 0/1 selector: column j picks lanes with lane % c == j.
        l = lax.broadcasted_iota(jnp.int32, (lanes, c), 0)
        j = lax.broadcasted_iota(jnp.int32, (lanes, c), 1)
        return ((l & (c - 1)) == j).astype(jnp.float32)

    def channel_to_lanes(c, lanes):
        # (c, lanes) 0/1 selector: tiles a per-channel (1,c) row across lanes.
        l = lax.broadcasted_iota(jnp.int32, (c, lanes), 1)
        j = lax.broadcasted_iota(jnp.int32, (c, lanes), 0)
        return ((l & (c - 1)) == j).astype(jnp.float32)

    def channel_stats(y_masked, c, count):
        # One-pass per-channel mean/var, reductions done on the MXU.
        rows, lanes = y_masked.shape
        ones_r = jnp.ones((1, rows), jnp.float32)
        g2c = group_to_channel(lanes, c)
        s = jnp.dot(jnp.dot(ones_r, y_masked,
                            preferred_element_type=jnp.float32),
                    g2c, preferred_element_type=jnp.float32)          # (1, c)
        ss = jnp.dot(jnp.dot(ones_r, y_masked * y_masked,
                             preferred_element_type=jnp.float32),
                     g2c, preferred_element_type=jnp.float32)         # (1, c)
        mean = s * (1.0 / count)
        var = jnp.maximum(ss * (1.0 / count) - mean * mean, 0.0)
        return mean, var

    def conv3(x2d, t_ref, rows_out):
        # Valid KxK conv = K matmuls against the per-kh block-Toeplitz weights.
        acc = jnp.dot(x2d[0:rows_out, :], t_ref[0],
                      preferred_element_type=jnp.float32)
        for kh in range(1, K):
            acc = acc + jnp.dot(x2d[kh:kh + rows_out, :], t_ref[kh],
                                preferred_element_type=jnp.float32)
        return acc

    def kernel(x_ref, t0_ref, t1_ref, p_ref, o_ref):
        # x_ref:  (n*h, w*cin)           lane-major input
        # t0_ref: (K, w*cin,  wo0*c0)    stage-0 block-Toeplitz weights
        # t1_ref: (K, wo0*c0, wo1*c1)    stage-1 block-Toeplitz weights
        # p_ref:  (4, c1)                rows: g0(padded), g1, beta1, unused
        # o_ref:  (n, ho1, wo1*c1)       lane-dense output slab
        x = x_ref[...]

        # ---- stage 0: conv0 (bias cancels under BN0) ----
        y0 = conv3(x, t0_ref, r0)                               # (r0, l0)
        y0m = jnp.where(valid_rows(r0, l0, ho0), y0, 0.0)
        _, var0 = channel_stats(y0m, c0, m0)

        # ---- BN0 folded into stage 1: only the scale survives; the shift is
        # a per-channel constant that BN1 (batch stats) removes exactly. ----
        g0 = p_ref[0:1, 0:c0]
        scale0 = g0 * lax.rsqrt(var0 + EPS)                     # (1, c0)
        scale0_row = jnp.dot(scale0, channel_to_lanes(c0, l0),
                             preferred_element_type=jnp.float32)
        y0s = y0 * scale0_row                                   # (r0, l0)

        # ---- stage 1: conv1 (bias cancels under BN1) ----
        y1 = conv3(y0s, t1_ref, r1)                             # (r1, l1)
        y1m = jnp.where(valid_rows(r1, l1, ho1), y1, 0.0)
        mean1, var1 = channel_stats(y1m, c1, m1)

        g1 = p_ref[1:2, 0:c1]
        b1 = p_ref[2:3, 0:c1]
        scale1 = g1 * lax.rsqrt(var1 + EPS)
        shift1 = b1 - mean1 * scale1
        c2l1 = channel_to_lanes(c1, l1)
        y1n = (y1 * jnp.dot(scale1, c2l1, preferred_element_type=jnp.float32)
               + jnp.dot(shift1, c2l1, preferred_element_type=jnp.float32))

        # Drop the image-gap rows; stores are lane-dense (192 lanes).
        for i in range(n):
            o_ref[i] = y1n[i * h:i * h + ho1, :]

    return kernel


@jax.jit
def model_forward(x_nchw, params):
    n, cin, h, w = x_nchw.shape
    c0 = params['w0'].shape[-1]
    c1 = params['w1'].shape[-1]
    assert (c0 & (c0 - 1)) == 0 and (c1 & (c1 - 1)) == 0 and c1 >= c0

    ho0, wo0 = h - K + 1, w - K + 1
    ho1, wo1 = ho0 - K + 1, wo0 - K + 1

    kernel = _make_fused_kernel(n, h, w, cin, c0, c1)

    # Layout plumbing (tiny, inside the same jitted executable).
    # TODO(synk): fold this transpose into the kernel / allow_input_fusion.
    x2d = jnp.transpose(x_nchw, (0, 2, 3, 1)).astype(jnp.float32)
    x2d = x2d.reshape(n * h, w * cin)
    t0 = _toeplitz_weights(params['w0'], w, wo0)       # (K, w*cin,  wo0*c0)
    t1 = _toeplitz_weights(params['w1'], wo0, wo1)     # (K, wo0*c0, wo1*c1)

    # Single packed BN-parameter operand.  conv biases b0/b1 and bn0's beta
    # are intentionally not passed: they cancel exactly under training-mode BN.
    p = jnp.zeros((4, c1), jnp.float32)
    p = p.at[0, :c0].set(params['g0'])
    p = p.at[1, :c1].set(params['g1'])
    p = p.at[2, :c1].set(params['beta1'])

    vmem = pl.BlockSpec(memory_space=pltpu.MemorySpace.VMEM)
    slab = pl.pallas_call(
        kernel,
        out_shape=jax.ShapeDtypeStruct((n, ho1, wo1 * c1), jnp.float32),
        in_specs=[vmem] * 4,
        out_specs=vmem,
    )(x2d, t0, t1, p)

    # Lane-dense slab (n, ho1, wo1*c1) -> NCHW.
    y = slab.reshape(n, ho1, wo1, c1)
    return jnp.transpose(y, (0, 3, 1, 2))


def reference_forward(x_nchw, params):
    """Pure-JAX reference (lax.conv + bias + batch-stat BN)."""
    def stage(x_nhwc, w, b, g, beta):
        y = lax.conv_general_dilated(
            x_nhwc, w, window_strides=(1, 1), padding='VALID',
            dimension_numbers=('NHWC', 'HWIO', 'NHWC'),
            precision=lax.Precision.HIGHEST)
        y = y + b.reshape(1, 1, 1, -1)
        mean = jnp.mean(y, axis=(0, 1, 2), keepdims=True)
        var = jnp.mean((y - mean) ** 2, axis=(0, 1, 2), keepdims=True)
        return (y - mean) * lax.rsqrt(var + EPS) * g.reshape(1, 1, 1, -1) \
            + beta.reshape(1, 1, 1, -1)

    x = jnp.transpose(x_nchw, (0, 2, 3, 1))
    x = stage(x, params['w0'], params['b0'], params['g0'], params['beta0'])
    x = stage(x, params['w1'], params['b1'], params['g1'], params['beta1'])
    return jnp.transpose(x, (0, 3, 1, 2))


def init_params(key):
    k0, k1, k2, k3 = jax.random.split(key, 4)
    # conv0: 4 -> 8, 3x3 (HWIO);  conv1: 8 -> 16, 3x3
    w0 = jax.random.normal(k0, (3, 3, 4, 8), jnp.float32) * 0.1
    b0 = jax.random.normal(k1, (8,), jnp.float32) * 0.1
    w1 = jax.random.normal(k2, (3, 3, 8, 16), jnp.float32) * 0.1
    b1 = jax.random.normal(k3, (16,), jnp.float32) * 0.1
    # BatchNorm2d default affine init: weight=1, bias=0
    return dict(
        w0=w0, b0=b0, g0=jnp.ones((8,), jnp.float32),
        beta0=jnp.zeros((8,), jnp.float32),
        w1=w1, b1=b1, g1=jnp.ones((16,), jnp.float32),
        beta1=jnp.zeros((16,), jnp.float32),
    )


if __name__ == "__main__":
    key = jax.random.PRNGKey(0)
    kx, kp = jax.random.split(key)
    # Small NCHW input consistent with the module (Cin=4); spatial 16 so both
    # valid 3x3 convs are well-defined: (2,4,16,16)->(2,8,14,14)->(2,16,12,12).
    x = jax.random.normal(kx, (2, 4, 16, 16), jnp.float32)
    params = init_params(kp)

    out = jax.block_until_ready(model_forward(x, params))
    ref = jax.block_until_ready(reference_forward(x, params))

    assert out.shape == (2, 16, 12, 12), out.shape
    assert jnp.allclose(out, ref, rtol=1e-4, atol=1e-4), \
        float(jnp.max(jnp.abs(out - ref)))

    print("KERNEL_OK")
</pallas_src>

<mosaic_0001>
module attributes {stable_mosaic.version = 11 : i64} {
  func.func @kernel(%arg0: memref<32x64xf32, #tpu.memory_space<vmem>>, %arg1: memref<3x64x112xf32, #tpu.memory_space<vmem>>, %arg2: memref<3x112x192xf32, #tpu.memory_space<vmem>>, %arg3: memref<4x16xf32, #tpu.memory_space<vmem>>, %arg4: memref<2x12x192xf32, #tpu.memory_space<vmem>>) attributes {dimension_semantics = [], scalar_prefetch = 0 : i64, scratch_operands = 0 : i64, tpu.core_type = #tpu.core_type<tc>} {
    %c0 = arith.constant 0 : index
    %c0_0 = arith.constant 0 : index
    %0 = vector.load %arg0[%c0, %c0_0] : memref<32x64xf32, #tpu.memory_space<vmem>>, vector<32x64xf32>
    %1 = vector.extract_strided_slice %0 {offsets = [0, 0], sizes = [30, 64], strides = [1, 1]} : vector<32x64xf32> to vector<30x64xf32>
    %c0_1 = arith.constant 0 : index
    %c0_2 = arith.constant 0 : index
    %c0_3 = arith.constant 0 : index
    %2 = vector.load %arg1[%c0_1, %c0_2, %c0_3] : memref<3x64x112xf32, #tpu.memory_space<vmem>>, vector<1x64x112xf32>
    %3 = vector.shape_cast %2 : vector<1x64x112xf32> to vector<64x112xf32>
    %cst = arith.constant dense<0.000000e+00> : vector<30x112xf32>
    %4 = tpu.matmul %1, %3, %cst {dimension_numbers = #tpu.dot_dimension_numbers<[1], [0], [0], [1], [0, 0, 1, 1], [], []>} : vector<30x64xf32>, vector<64x112xf32>, vector<30x112xf32> -> vector<30x112xf32>
    %5 = vector.extract_strided_slice %0 {offsets = [1, 0], sizes = [30, 64], strides = [1, 1]} : vector<32x64xf32> to vector<30x64xf32>
    %c1 = arith.constant 1 : index
    %c0_4 = arith.constant 0 : index
    %c0_5 = arith.constant 0 : index
    %6 = vector.load %arg1[%c1, %c0_4, %c0_5] : memref<3x64x112xf32, #tpu.memory_space<vmem>>, vector<1x64x112xf32>
    %7 = vector.shape_cast %6 : vector<1x64x112xf32> to vector<64x112xf32>
    %cst_6 = arith.constant dense<0.000000e+00> : vector<30x112xf32>
    %8 = tpu.matmul %5, %7, %cst_6 {dimension_numbers = #tpu.dot_dimension_numbers<[1], [0], [0], [1], [0, 0, 1, 1], [], []>} : vector<30x64xf32>, vector<64x112xf32>, vector<30x112xf32> -> vector<30x112xf32>
    %9 = arith.addf %4, %8 : vector<30x112xf32>
    %10 = vector.extract_strided_slice %0 {offsets = [2, 0], sizes = [30, 64], strides = [1, 1]} : vector<32x64xf32> to vector<30x64xf32>
    %c2 = arith.constant 2 : index
    %c0_7 = arith.constant 0 : index
    %c0_8 = arith.constant 0 : index
    %11 = vector.load %arg1[%c2, %c0_7, %c0_8] : memref<3x64x112xf32, #tpu.memory_space<vmem>>, vector<1x64x112xf32>
    %12 = vector.shape_cast %11 : vector<1x64x112xf32> to vector<64x112xf32>
    %cst_9 = arith.constant dense<0.000000e+00> : vector<30x112xf32>
    %13 = tpu.matmul %10, %12, %cst_9 {dimension_numbers = #tpu.dot_dimension_numbers<[1], [0], [0], [1], [0, 0, 1, 1], [], []>} : vector<30x64xf32>, vector<64x112xf32>, vector<30x112xf32> -> vector<30x112xf32>
    %14 = arith.addf %9, %13 : vector<30x112xf32>
    %15 = tpu.iota {dimensions = array<i32: 0>} : vector<30x112xi32>
    %c14_i32 = arith.constant 14 : i32
    %16 = vector.broadcast %c14_i32 : i32 to vector<30x112xi32>
    %17 = arith.cmpi slt, %15, %16 : vector<30x112xi32>
    %c16_i32 = arith.constant 16 : i32
    %18 = vector.broadcast %c16_i32 : i32 to vector<30x112xi32>
    %19 = arith.cmpi sge, %15, %18 : vector<30x112xi32>
    %c30_i32 = arith.constant 30 : i32
    %20 = vector.broadcast %c30_i32 : i32 to vector<30x112xi32>
    %21 = arith.cmpi slt, %15, %20 : vector<30x112xi32>
    %22 = arith.andi %19, %21 : vector<30x112xi1>
    %23 = arith.ori %17, %22 : vector<30x112xi1>
    %cst_10 = arith.constant 0.000000e+00 : f32
    %24 = vector.broadcast %cst_10 : f32 to vector<30x112xf32>
    %25 = arith.select %23, %14, %24 : vector<30x112xi1>, vector<30x112xf32>
    %cst_11 = arith.constant 1.000000e+00 : f32
    %26 = vector.broadcast %cst_11 : f32 to vector<1x30xf32>
    %27 = tpu.iota {dimensions = array<i32: 0>} : vector<112x8xi32>
    %28 = tpu.iota {dimensions = array<i32: 1>} : vector<112x8xi32>
    %c7_i32 = arith.constant 7 : i32
    %29 = vector.broadcast %c7_i32 : i32 to vector<112x8xi32>
    %30 = arith.andi %27, %29 : vector<112x8xi32>
    %31 = arith.cmpi eq, %30, %28 : vector<112x8xi32>
    %32 = arith.extui %31 : vector<112x8xi1> to vector<112x8xi32>
    %33 = arith.sitofp %32 : vector<112x8xi32> to vector<112x8xf32>
    %cst_12 = arith.constant dense<0.000000e+00> : vector<1x112xf32>
    %34 = tpu.matmul %26, %25, %cst_12 {dimension_numbers = #tpu.dot_dimension_numbers<[1], [0], [0], [1], [0, 0, 1, 1], [], []>} : vector<1x30xf32>, vector<30x112xf32>, vector<1x112xf32> -> vector<1x112xf32>
    %cst_13 = arith.constant dense<0.000000e+00> : vector<1x8xf32>
    %35 = tpu.matmul %34, %33, %cst_13 {dimension_numbers = #tpu.dot_dimension_numbers<[1], [0], [0], [1], [0, 0, 1, 1], [], []>} : vector<1x112xf32>, vector<112x8xf32>, vector<1x8xf32> -> vector<1x8xf32>
    %36 = arith.mulf %25, %25 : vector<30x112xf32>
    %cst_14 = arith.constant dense<0.000000e+00> : vector<1x112xf32>
    %37 = tpu.matmul %26, %36, %cst_14 {dimension_numbers = #tpu.dot_dimension_numbers<[1], [0], [0], [1], [0, 0, 1, 1], [], []>} : vector<1x30xf32>, vector<30x112xf32>, vector<1x112xf32> -> vector<1x112xf32>
    %cst_15 = arith.constant dense<0.000000e+00> : vector<1x8xf32>
    %38 = tpu.matmul %37, %33, %cst_15 {dimension_numbers = #tpu.dot_dimension_numbers<[1], [0], [0], [1], [0, 0, 1, 1], [], []>} : vector<1x112xf32>, vector<112x8xf32>, vector<1x8xf32> -> vector<1x8xf32>
    %cst_16 = arith.constant 0.00255102036 : f32
    %39 = vector.broadcast %cst_16 : f32 to vector<1x8xf32>
    %40 = arith.mulf %35, %39 : vector<1x8xf32>
    %cst_17 = arith.constant 0.00255102036 : f32
    %41 = vector.broadcast %cst_17 : f32 to vector<1x8xf32>
    %42 = arith.mulf %38, %41 : vector<1x8xf32>
    %43 = arith.mulf %40, %40 : vector<1x8xf32>
    %44 = arith.subf %42, %43 : vector<1x8xf32>
    %cst_18 = arith.constant 0.000000e+00 : f32
    %45 = vector.broadcast %cst_18 : f32 to vector<1x8xf32>
    %46 = arith.maximumf %44, %45 : vector<1x8xf32>
    %c0_19 = arith.constant 0 : index
    %c0_20 = arith.constant 0 : index
    %47 = vector.load %arg3[%c0_19, %c0_20] : memref<4x16xf32, #tpu.memory_space<vmem>>, vector<1x8xf32>
    %cst_21 = arith.constant 9.99999974E-6 : f32
    %48 = vector.broadcast %cst_21 : f32 to vector<1x8xf32>
    %49 = arith.addf %46, %48 : vector<1x8xf32>
    %50 = math.rsqrt %49 : vector<1x8xf32>
    %51 = arith.mulf %47, %50 : vector<1x8xf32>
    %52 = tpu.iota {dimensions = array<i32: 1>} : vector<8x112xi32>
    %53 = tpu.iota {dimensions = array<i32: 0>} : vector<8x112xi32>
    %c7_i32_22 = arith.constant 7 : i32
    %54 = vector.broadcast %c7_i32_22 : i32 to vector<8x112xi32>
    %55 = arith.andi %52, %54 : vector<8x112xi32>
    %56 = arith.cmpi eq, %55, %53 : vector<8x112xi32>
    %57 = arith.extui %56 : vector<8x112xi1> to vector<8x112xi32>
    %58 = arith.sitofp %57 : vector<8x112xi32> to vector<8x112xf32>
    %cst_23 = arith.constant dense<0.000000e+00> : vector<1x112xf32>
    %59 = tpu.matmul %51, %58, %cst_23 {dimension_numbers = #tpu.dot_dimension_numbers<[1], [0], [0], [1], [0, 0, 1, 1], [], []>} : vector<1x8xf32>, vector<8x112xf32>, vector<1x112xf32> -> vector<1x112xf32>
    %60 = vector.broadcast %59 : vector<1x112xf32> to vector<30x112xf32>
    %61 = arith.mulf %14, %60 : vector<30x112xf32>
    %62 = vector.extract_strided_slice %61 {offsets = [0, 0], sizes = [28, 112], strides = [1, 1]} : vector<30x112xf32> to vector<28x112xf32>
    %c0_24 = arith.constant 0 : index
    %c0_25 = arith.constant 0 : index
    %c0_26 = arith.constant 0 : index
    %63 = vector.load %arg2[%c0_24, %c0_25, %c0_26] : memref<3x112x192xf32, #tpu.memory_space<vmem>>, vector<1x112x192xf32>
    %64 = vector.shape_cast %63 : vector<1x112x192xf32> to vector<112x192xf32>
    %cst_27 = arith.constant dense<0.000000e+00> : vector<28x192xf32>
    %65 = tpu.matmul %62, %64, %cst_27 {dimension_numbers = #tpu.dot_dimension_numbers<[1], [0], [0], [1], [0, 0, 1, 1], [], []>} : vector<28x112xf32>, vector<112x192xf32>, vector<28x192xf32> -> vector<28x192xf32>
    %66 = vector.extract_strided_slice %61 {offsets = [1, 0], sizes = [28, 112], strides = [1, 1]} : vector<30x112xf32> to vector<28x112xf32>
    %c1_28 = arith.constant 1 : index
    %c0_29 = arith.constant 0 : index
    %c0_30 = arith.constant 0 : index
    %67 = vector.load %arg2[%c1_28, %c0_29, %c0_30] : memref<3x112x192xf32, #tpu.memory_space<vmem>>, vector<1x112x192xf32>
    %68 = vector.shape_cast %67 : vector<1x112x192xf32> to vector<112x192xf32>
    %cst_31 = arith.constant dense<0.000000e+00> : vector<28x192xf32>
    %69 = tpu.matmul %66, %68, %cst_31 {dimension_numbers = #tpu.dot_dimension_numbers<[1], [0], [0], [1], [0, 0, 1, 1], [], []>} : vector<28x112xf32>, vector<112x192xf32>, vector<28x192xf32> -> vector<28x192xf32>
    %70 = arith.addf %65, %69 : vector<28x192xf32>
    %71 = vector.extract_strided_slice %61 {offsets = [2, 0], sizes = [28, 112], strides = [1, 1]} : vector<30x112xf32> to vector<28x112xf32>
    %c2_32 = arith.constant 2 : index
    %c0_33 = arith.constant 0 : index
    %c0_34 = arith.constant 0 : index
    %72 = vector.load %arg2[%c2_32, %c0_33, %c0_34] : memref<3x112x192xf32, #tpu.memory_space<vmem>>, vector<1x112x192xf32>
    %73 = vector.shape_cast %72 : vector<1x112x192xf32> to vector<112x192xf32>
    %cst_35 = arith.constant dense<0.000000e+00> : vector<28x192xf32>
    %74 = tpu.matmul %71, %73, %cst_35 {dimension_numbers = #tpu.dot_dimension_numbers<[1], [0], [0], [1], [0, 0, 1, 1], [], []>} : vector<28x112xf32>, vector<112x192xf32>, vector<28x192xf32> -> vector<28x192xf32>
    %75 = arith.addf %70, %74 : vector<28x192xf32>
    %76 = tpu.iota {dimensions = array<i32: 0>} : vector<28x192xi32>
    %c12_i32 = arith.constant 12 : i32
    %77 = vector.broadcast %c12_i32 : i32 to vector<28x192xi32>
    %78 = arith.cmpi slt, %76, %77 : vector<28x192xi32>
    %c16_i32_36 = arith.constant 16 : i32
    %79 = vector.broadcast %c16_i32_36 : i32 to vector<28x192xi32>
    %80 = arith.cmpi sge, %76, %79 : vector<28x192xi32>
    %c28_i32 = arith.constant 28 : i32
    %81 = vector.broadcast %c28_i32 : i32 to vector<28x192xi32>
    %82 = arith.cmpi slt, %76, %81 : vector<28x192xi32>
    %83 = arith.andi %80, %82 : vector<28x192xi1>
    %84 = arith.ori %78, %83 : vector<28x192xi1>
    %cst_37 = arith.constant 0.000000e+00 : f32
    %85 = vector.broadcast %cst_37 : f32 to vector<28x192xf32>
    %86 = arith.select %84, %75, %85 : vector<28x192xi1>, vector<28x192xf32>
    %cst_38 = arith.constant 1.000000e+00 : f32
    %87 = vector.broadcast %cst_38 : f32 to vector<1x28xf32>
    %88 = tpu.iota {dimensions = array<i32: 0>} : vector<192x16xi32>
    %89 = tpu.iota {dimensions = array<i32: 1>} : vector<192x16xi32>
    %c15_i32 = arith.constant 15 : i32
    %90 = vector.broadcast %c15_i32 : i32 to vector<192x16xi32>
    %91 = arith.andi %88, %90 : vector<192x16xi32>
    %92 = arith.cmpi eq, %91, %89 : vector<192x16xi32>
    %93 = arith.extui %92 : vector<192x16xi1> to vector<192x16xi32>
    %94 = arith.sitofp %93 : vector<192x16xi32> to vector<192x16xf32>
    %cst_39 = arith.constant dense<0.000000e+00> : vector<1x192xf32>
    %95 = tpu.matmul %87, %86, %cst_39 {dimension_numbers = #tpu.dot_dimension_numbers<[1], [0], [0], [1], [0, 0, 1, 1], [], []>} : vector<1x28xf32>, vector<28x192xf32>, vector<1x192xf32> -> vector<1x192xf32>
    %cst_40 = arith.constant dense<0.000000e+00> : vector<1x16xf32>
    %96 = tpu.matmul %95, %94, %cst_40 {dimension_numbers = #tpu.dot_dimension_numbers<[1], [0], [0], [1], [0, 0, 1, 1], [], []>} : vector<1x192xf32>, vector<192x16xf32>, vector<1x16xf32> -> vector<1x16xf32>
    %97 = arith.mulf %86, %86 : vector<28x192xf32>
    %cst_41 = arith.constant dense<0.000000e+00> : vector<1x192xf32>
    %98 = tpu.matmul %87, %97, %cst_41 {dimension_numbers = #tpu.dot_dimension_numbers<[1], [0], [0], [1], [0, 0, 1, 1], [], []>} : vector<1x28xf32>, vector<28x192xf32>, vector<1x192xf32> -> vector<1x192xf32>
    %cst_42 = arith.constant dense<0.000000e+00> : vector<1x16xf32>
    %99 = tpu.matmul %98, %94, %cst_42 {dimension_numbers = #tpu.dot_dimension_numbers<[1], [0], [0], [1], [0, 0, 1, 1], [], []>} : vector<1x192xf32>, vector<192x16xf32>, vector<1x16xf32> -> vector<1x16xf32>
    %cst_43 = arith.constant 0.00347222225 : f32
    %100 = vector.broadcast %cst_43 : f32 to vector<1x16xf32>
    %101 = arith.mulf %96, %100 : vector<1x16xf32>
    %cst_44 = arith.constant 0.00347222225 : f32
    %102 = vector.broadcast %cst_44 : f32 to vector<1x16xf32>
    %103 = arith.mulf %99, %102 : vector<1x16xf32>
    %104 = arith.mulf %101, %101 : vector<1x16xf32>
    %105 = arith.subf %103, %104 : vector<1x16xf32>
    %cst_45 = arith.constant 0.000000e+00 : f32
    %106 = vector.broadcast %cst_45 : f32 to vector<1x16xf32>
    %107 = arith.maximumf %105, %106 : vector<1x16xf32>
    %c1_46 = arith.constant 1 : index
    %c0_47 = arith.constant 0 : index
    %108 = vector.load %arg3[%c1_46, %c0_47] : memref<4x16xf32, #tpu.memory_space<vmem>>, vector<1x16xf32>
    %c2_48 = arith.constant 2 : index
    %c0_49 = arith.constant 0 : index
    %109 = vector.load %arg3[%c2_48, %c0_49] : memref<4x16xf32, #tpu.memory_space<vmem>>, vector<1x16xf32>
    %cst_50 = arith.constant 9.99999974E-6 : f32
    %110 = vector.broadcast %cst_50 : f32 to vector<1x16xf32>
    %111 = arith.addf %107, %110 : vector<1x16xf32>
    %112 = math.rsqrt %111 : vector<1x16xf32>
    %113 = arith.mulf %108, %112 : vector<1x16xf32>
    %114 = arith.mulf %101, %113 : vector<1x16xf32>
    %115 = arith.subf %109, %114 : vector<1x16xf32>
    %116 = tpu.iota {dimensions = array<i32: 1>} : vector<16x192xi32>
    %117 = tpu.iota {dimensions = array<i32: 0>} : vector<16x192xi32>
    %c15_i32_51 = arith.constant 15 : i32
    %118 = vector.broadcast %c15_i32_51 : i32 to vector<16x192xi32>
    %119 = arith.andi %116, %118 : vector<16x192xi32>
    %120 = arith.cmpi eq, %119, %117 : vector<16x192xi32>
    %121 = arith.extui %120 : vector<16x192xi1> to vector<16x192xi32>
    %122 = arith.sitofp %121 : vector<16x192xi32> to vector<16x192xf32>
    %cst_52 = arith.constant dense<0.000000e+00> : vector<1x192xf32>
    %123 = tpu.matmul %113, %122, %cst_52 {dimension_numbers = #tpu.dot_dimension_numbers<[1], [0], [0], [1], [0, 0, 1, 1], [], []>} : vector<1x16xf32>, vector<16x192xf32>, vector<1x192xf32> -> vector<1x192xf32>
    %124 = vector.broadcast %123 : vector<1x192xf32> to vector<28x192xf32>
    %125 = arith.mulf %75, %124 : vector<28x192xf32>
    %cst_53 = arith.constant dense<0.000000e+00> : vector<1x192xf32>
    %126 = tpu.matmul %115, %122, %cst_53 {dimension_numbers = #tpu.dot_dimension_numbers<[1], [0], [0], [1], [0, 0, 1, 1], [], []>} : vector<1x16xf32>, vector<16x192xf32>, vector<1x192xf32> -> vector<1x192xf32>
    %127 = vector.broadcast %126 : vector<1x192xf32> to vector<28x192xf32>
    %128 = arith.addf %125, %127 : vector<28x192xf32>
    %129 = vector.extract_strided_slice %128 {offsets = [0, 0], sizes = [12, 192], strides = [1, 1]} : vector<28x192xf32> to vector<12x192xf32>
    %c0_54 = arith.constant 0 : index
    %c0_55 = arith.constant 0 : index
    %c0_56 = arith.constant 0 : index
    %130 = vector.load %arg4[%c0_54, %c0_55, %c0_56] : memref<2x12x192xf32, #tpu.memory_space<vmem>>, vector<1x12x192xf32>
    %131 = vector.shape_cast %130 : vector<1x12x192xf32> to vector<12x192xf32>
    %132 = vector.shape_cast %129 : vector<12x192xf32> to vector<1x12x192xf32>
    tpu.vector_store %arg4[%c0_54, %c0_55, %c0_56], %132 {strides = array<i32>} : memref<2x12x192xf32, #tpu.memory_space<vmem>>, vector<1x12x192xf32>,
    %133 = vector.extract_strided_slice %128 {offsets = [16, 0], sizes = [12, 192], strides = [1, 1]} : vector<28x192xf32> to vector<12x192xf32>
    %c1_57 = arith.constant 1 : index
    %c0_58 = arith.constant 0 : index
    %c0_59 = arith.constant 0 : index
    %134 = vector.load %arg4[%c1_57, %c0_58, %c0_59] : memref<2x12x192xf32, #tpu.memory_space<vmem>>, vector<1x12x192xf32>
    %135 = vector.shape_cast %134 : vector<1x12x192xf32> to vector<12x192xf32>
    %136 = vector.shape_cast %133 : vector<12x192xf32> to vector<1x12x192xf32>
    tpu.vector_store %arg4[%c1_57, %c0_58, %c0_59], %136 {strides = array<i32>} : memref<2x12x192xf32, #tpu.memory_space<vmem>>, vector<1x12x192xf32>,
    return
  }
}

</mosaic_0001>

<llo_original>
// kernel: model_forward.1
$region0: #{model_forward.1}
  #allocation0 [shape = 'u32[]', space=smem, size = 0x4, offset = 0x4, fixed_abs, tag = 'smem constant byte address 0x4 - core index']
  #allocation1 [shape = 'u32[144,128]{1,0:T(1,128)}', space=vmem, size = 0x12000, scoped, tag = 'internal scratch']
  %s0 = inlined_call_operand.vmem [shape: f32[32,64], index: 0, kind: input, shape index: {}]
  %s1 = inlined_call_operand.vmem [shape: f32[3,64,112], index: 1, kind: input, shape index: {}]
  %s2 = inlined_call_operand.vmem [shape: f32[3,112,192], index: 2, kind: input, shape index: {}]
  %s3 = inlined_call_operand.vmem [shape: f32[4,16], index: 3, kind: input, shape index: {}]
  %s4 = inlined_call_operand.vmem [shape: f32[2,12,192], index: 4, kind: output, shape index: {}]
  %s5 = sld [smem:[#allocation0]]
  $region26: #{model_forward.1} parent=0
    _
  %s7 = ssub.s32 1, %s5
  %s8 = scalar_select 0, %s7, %s5
  // Predicated region
  $region2: #{model_forward.1} parent=0 // pred_check
    _
  $region3: #{model_forward.1} parent=0 // pred_check_branch
    %10 = sbr.rel (0) target = $region5
  $region4: #{model_forward.1} parent=0 // pred_region
    _
  $region5: #{model_forward.1} parent=0 // pred_fallthru
    _
  // Predicated region
  $region6: #{model_forward.1} parent=0 // pred_check
    _
  $region7: #{model_forward.1} parent=0 // pred_check_branch
    %12 = sbr.rel (0) target = $region9
  $region8: #{model_forward.1} parent=0 // pred_region
    _
  $region9: #{model_forward.1} parent=0 // pred_fallthru
    _
  // Predicated region
  $region10: #{model_forward.1} parent=0 // pred_check
    _
  $region11: #{model_forward.1} parent=0 // pred_check_branch
    %14 = sbr.rel (0) target = $region13
  $region12: #{model_forward.1} parent=0 // pred_region
    _
  $region13: #{model_forward.1} parent=0 // pred_fallthru
    _
  // Predicated region
  $region14: #{model_forward.1} parent=0 // pred_check
    _
  $region15: #{model_forward.1} parent=0 // pred_check_branch
    %16 = sbr.rel (0) target = $region17
  $region16: #{model_forward.1} parent=0 // pred_region
    _
  $region17: #{model_forward.1} parent=0 // pred_fallthru
    _
  %v17 = vld [vmem:[%s0] sm:$0xff]
  %v18 = vld [vmem:[%s0 + $0x8] sm:$0xff]
  %v19 = vld [vmem:[%s0 + $0x10] sm:$0xff]
  %v20 = vld [vmem:[%s0 + $0x18] sm:$0xff]
  %v21 = vld [vmem:[%s1] sm:$0xff]
  %v22 = vld [vmem:[%s1 + $0x8] sm:$0xff]
  %v23 = vld [vmem:[%s1 + $0x10] sm:$0xff]
  %v24 = vld [vmem:[%s1 + $0x18] sm:$0xff]
  %v25 = vld [vmem:[%s1 + $0x20] sm:$0xff]
  %v26 = vld [vmem:[%s1 + $0x28] sm:$0xff]
  %v27 = vld [vmem:[%s1 + $0x30] sm:$0xff]
  %v28 = vld [vmem:[%s1 + $0x38] sm:$0xff]
  %s29 = scalar_lea.vmem %s1, 64
  %v30 = vld [vmem:[%s29] sm:$0xff]
  %v31 = vld [vmem:[%s29 + $0x8] sm:$0xff]
  %v32 = vld [vmem:[%s29 + $0x10] sm:$0xff]
  %v33 = vld [vmem:[%s29 + $0x18] sm:$0xff]
  %v34 = vld [vmem:[%s29 + $0x20] sm:$0xff]
  %v35 = vld [vmem:[%s29 + $0x28] sm:$0xff]
  %v36 = vld [vmem:[%s29 + $0x30] sm:$0xff]
  %v37 = vld [vmem:[%s29 + $0x38] sm:$0xff]
  %vm42 = vcmask 1046528
  %v43 = vrot.slane %v17, 1
  %v44 = vrot.slane %v18, 1
  %v45 = vsel %vm42, %v43, %v44
  %v46 = vrot.slane %v19, 1
  %v47 = vsel %vm42, %v44, %v46
  %v48 = vrot.slane %v20, 1
  %v49 = vsel %vm42, %v46, %v48
  %vm50 = vcmask 523264
  %v51 = vsel %vm50, %v45, 0
  %v53 = vsel %vm50, %v47, 0
  %v55 = vsel %vm50, %v49, 0
  %v57 = vsel %vm50, %v48, 0
  %59 = vmatprep.subr.mxu0 0.0
  %60 = vmatpush1.msra.mxu0 %v30
  %61 = vmatprep.subr.mxu0 0.0
  %62 = vmatpush1.msra.mxu0 %v31
  %63 = vmatprep.subr.mxu0 0.0
  %64 = vmatpush1.msra.mxu0 %v32
  %65 = vmatprep.subr.mxu0 0.0
  %66 = vmatpush1.msra.mxu0 %v33
  %67 = vmatprep.subr.mxu0 0.0
  %68 = vmatpush1.msra.mxu0 %v34
  %69 = vmatprep.subr.mxu0 0.0
  %70 = vmatpush1.msra.mxu0 %v35
  %71 = vmatprep.subr.mxu0 0.0
  %72 = vmatpush1.msra.mxu0 %v36
  %73 = vmatprep.subr.mxu0 0.0
  %74 = vmatpush1.msra.mxu0 %v37
  %75 = vmatprep.subr.mxu0 0.0
  %76 = vmatpush1.msra.mxu0 0.0
  %77 = vmatprep.subr.mxu0 0.0
  %78 = vmatpush1.msra.mxu0 0.0
  %79 = vmatprep.subr.mxu0 0.0
  %80 = vmatpush1.msra.mxu0 0.0
  %81 = vmatprep.subr.mxu0 0.0
  %82 = vmatpush1.msra.mxu0 0.0
  %83 = vmatprep.subr.mxu0 0.0
  %84 = vmatpush1.msra.mxu0 0.0
  %85 = vmatprep.subr.mxu0 0.0
  %86 = vmatpush1.msra.mxu0 0.0
  %87 = vmatprep.subr.mxu0 0.0
  %88 = vmatpush1.msra.mxu0 0.0
  %89 = vmatprep.subr.mxu0 0.0
  %90 = vmatpush1.msra.mxu0 0.0
  %91 = vmatprep.subr.mxu0 0.0
  %92 = vmatpush1.msra.mxu0 0.0
  %93 = vmatprep.subr.mxu0 0.0
  %94 = vmatpush1.msra.mxu0 0.0
  %95 = vmatprep.subr.mxu0 0.0
  %96 = vmatpush1.msra.mxu0 0.0
  %97 = vmatprep.subr.mxu0 0.0
  %98 = vmatpush1.msra.mxu0 0.0
  %99 = vmatprep.subr.mxu0 0.0
  %100 = vmatpush1.msra.mxu0 0.0
  %101 = vmatprep.subr.mxu0 0.0
  %102 = vmatpush1.msra.mxu0 0.0
  %103 = vmatprep.subr.mxu0 0.0
  %104 = vmatpush1.msra.mxu0 0.0
  %105 = vmatprep.subr.mxu0 0.0
  %106 = vmatpush1.msra.mxu0 0.0
  %107 = vmatprep.subr.mxu0 0.0
  %108 = vmatpush1.msra.mxu0 0.0
  %109 = vmatprep.subr.mxu0 0.0
  %110 = vmatpush1.msra.mxu0 0.0
  %111 = vmatprep.subr.mxu0 0.0
  %112 = vmatpush1.msra.mxu0 0.0
  %113 = vmatprep.subr.mxu0 0.0
  %114 = vmatpush1.msra.mxu0 0.0
  %115 = vmatprep.subr.mxu0 0.0
  %116 = vmatpush1.msra.mxu0 0.0
  %117 = vmatprep.subr.mxu0 0.0
  %118 = vmatpush1.msra.mxu0 0.0
  %119 = vmatprep.subr.mxu0 0.0
  %120 = vmatpush1.msra.mxu0 0.0
  %121 = vmatprep.subr.mxu0 0.0
  %122 = vmatpush1.msra.mxu0 0.0
  %123 = vmatprep.mubr.f32.mxu0 0.0
  %124 = vmatmul.mubr.f32.gmra.mrb[0].mxu0 %v51
  %v125 = vpop.f32.mrb[0].mxu0
  %v126 = vadd.f32 0.0, %v125
  %v127 = vpop.f32.mrb[0].mxu0
  %128 = vmatprep.mubr.f32.mxu0 0.0
  %129 = vmatmul.mubr.f32.gmra.mrb[0].mxu0 %v53
  %v130 = vpop.f32.mrb[0].mxu0
  %v131 = vadd.f32 0.0, %v130
  %v132 = vpop.f32.mrb[0].mxu0
  %133 = vmatprep.mubr.f32.mxu0 0.0
  %134 = vmatmul.mubr.f32.gmra.mrb[0].mxu0 %v55
  %v135 = vpop.f32.mrb[0].mxu0
  %v136 = vadd.f32 0.0, %v135
  %v137 = vpop.f32.mrb[0].mxu0
  %138 = vmatprep.mubr.f32.mxu0 0.0
  %139 = vmatmul.mubr.f32.gmra.mrb[0].mxu0 %v57
  %v140 = vpop.f32.mrb[0].mxu0
  %v141 = vadd.f32 0.0, %v140
  %v142 = vpop.f32.mrb[0].mxu0
  %143 = vdwg.mxu0
  %v144 = vsel %vm50, %v17, 0
  %v146 = vsel %vm50, %v18, 0
  %v148 = vsel %vm50, %v19, 0
  %v150 = vsel %vm50, %v20, 0
  %152 = vmatprep.subr.mxu0 0.0
  %153 = vmatpush1.msra.mxu0 %v21
  %154 = vmatprep.subr.mxu0 0.0
  %155 = vmatpush1.msra.mxu0 %v22
  %156 = vmatprep.subr.mxu0 0.0
  %157 = vmatpush1.msra.mxu0 %v23
  %158 = vmatprep.subr.mxu0 0.0
  %159 = vmatpush1.msra.mxu0 %v24
  %160 = vmatprep.subr.mxu0 0.0
  %161 = vmatpush1.msra.mxu0 %v25
  %162 = vmatprep.subr.mxu0 0.0
  %163 = vmatpush1.msra.mxu0 %v26
  %164 = vmatprep.subr.mxu0 0.0
  %165 = vmatpush1.msra.mxu0 %v27
  %166 = vmatprep.subr.mxu0 0.0
  %167 = vmatpush1.msra.mxu0 %v28
  %168 = vmatprep.subr.mxu0 0.0
  %169 = vmatpush1.msra.mxu0 0.0
  %170 = vmatprep.subr.mxu0 0.0
  %171 = vmatpush1.msra.mxu0 0.0
  %172 = vmatprep.subr.mxu0 0.0
  %173 = vmatpush1.msra.mxu0 0.0
  %174 = vmatprep.subr.mxu0 0.0
  %175 = vmatpush1.msra.mxu0 0.0
  %176 = vmatprep.subr.mxu0 0.0
  %177 = vmatpush1.msra.mxu0 0.0
  %178 = vmatprep.subr.mxu0 0.0
  %179 = vmatpush1.msra.mxu0 0.0
  %180 = vmatprep.subr.mxu0 0.0
  %181 = vmatpush1.msra.mxu0 0.0
  %182 = vmatprep.subr.mxu0 0.0
  %183 = vmatpush1.msra.mxu0 0.0
  %184 = vmatprep.subr.mxu0 0.0
  %185 = vmatpush1.msra.mxu0 0.0
  %186 = vmatprep.subr.mxu0 0.0
  %187 = vmatpush1.msra.mxu0 0.0
  %188 = vmatprep.subr.mxu0 0.0
  %189 = vmatpush1.msra.mxu0 0.0
  %190 = vmatprep.subr.mxu0 0.0
  %191 = vmatpush1.msra.mxu0 0.0
  %192 = vmatprep.subr.mxu0 0.0
  %193 = vmatpush1.msra.mxu0 0.0
  %194 = vmatprep.subr.mxu0 0.0
  %195 = vmatpush1.msra.mxu0 0.0
  %196 = vmatprep.subr.mxu0 0.0
  %197 = vmatpush1.msra.mxu0 0.0
  %198 = vmatprep.subr.mxu0 0.0
  %199 = vmatpush1.msra.mxu0 0.0
  %200 = vmatprep.subr.mxu0 0.0
  %201 = vmatpush1.msra.mxu0 0.0
  %202 = vmatprep.subr.mxu0 0.0
  %203 = vmatpush1.msra.mxu0 0.0
  %204 = vmatprep.subr.mxu0 0.0
  %205 = vmatpush1.msra.mxu0 0.0
  %206 = vmatprep.subr.mxu0 0.0
  %207 = vmatpush1.msra.mxu0 0.0
  %208 = vmatprep.subr.mxu0 0.0
  %209 = vmatpush1.msra.mxu0 0.0
  %210 = vmatprep.subr.mxu0 0.0
  %211 = vmatpush1.msra.mxu0 0.0
  %212 = vmatprep.subr.mxu0 0.0
  %213 = vmatpush1.msra.mxu0 0.0
  %214 = vmatprep.subr.mxu0 0.0
  %215 = vmatpush1.msra.mxu0 0.0
  %216 = vmatprep.mubr.f32.mxu0 0.0
  %217 = vmatmul.mubr.f32.gmra.mrb[0].mxu0 %v144
  %v218 = vpop.f32.mrb[0].mxu0
  %v219 = vadd.f32 %v126, %v218
  %v220 = vpop.f32.mrb[0].mxu0
  %221 = vmatprep.mubr.f32.mxu0 0.0
  %222 = vmatmul.mubr.f32.gmra.mrb[0].mxu0 %v146
  %v223 = vpop.f32.mrb[0].mxu0
  %v224 = vadd.f32 %v131, %v223
  %v225 = vpop.f32.mrb[0].mxu0
  %226 = vmatprep.mubr.f32.mxu0 0.0
  %227 = vmatmul.mubr.f32.gmra.mrb[0].mxu0 %v148
  %v228 = vpop.f32.mrb[0].mxu0
  %v229 = vadd.f32 %v136, %v228
  %v230 = vpop.f32.mrb[0].mxu0
  %231 = vmatprep.mubr.f32.mxu0 0.0
  %232 = vmatmul.mubr.f32.gmra.mrb[0].mxu0 %v150
  %v233 = vpop.f32.mrb[0].mxu0
  %v234 = vadd.f32 %v141, %v233
  %v235 = vpop.f32.mrb[0].mxu0
  %236 = vdwg.mxu0
  %s237 = scalar_lea.vmem %s1, 128
  %v238 = vld [vmem:[%s237] sm:$0xff]
  %v239 = vld [vmem:[%s237 + $0x8] sm:$0xff]
  %v240 = vld [vmem:[%s237 + $0x10] sm:$0xff]
  %v241 = vld [vmem:[%s237 + $0x18] sm:$0xff]
  %v242 = vld [vmem:[%s237 + $0x20] sm:$0xff]
  %v243 = vld [vmem:[%s237 + $0x28] sm:$0xff]
  %v244 = vld [vmem:[%s237 + $0x30] sm:$0xff]
  %v245 = vld [vmem:[%s237 + $0x38] sm:$0xff]
  %vm246 = vcmask 1045504
  %v247 = vrot.slane %v17, 2
  %v248 = vrot.slane %v18, 2
  %v249 = vsel %vm246, %v247, %v248
  %v250 = vrot.slane %v19, 2
  %v251 = vsel %vm246, %v248, %v250
  %v252 = vrot.slane %v20, 2
  %v253 = vsel %vm246, %v250, %v252
  %v254 = vsel %vm50, %v249, 0
  %v256 = vsel %vm50, %v251, 0
  %v258 = vsel %vm50, %v253, 0
  %v260 = vsel %vm50, %v252, 0
  %262 = vmatprep.subr.mxu0 0.0
  %263 = vmatpush1.msra.mxu0 %v238
  %264 = vmatprep.subr.mxu0 0.0
  %265 = vmatpush1.msra.mxu0 %v239
  %266 = vmatprep.subr.mxu0 0.0
  %267 = vmatpush1.msra.mxu0 %v240
  %268 = vmatprep.subr.mxu0 0.0
  %269 = vmatpush1.msra.mxu0 %v241
  %270 = vmatprep.subr.mxu0 0.0
  %271 = vmatpush1.msra.mxu0 %v242
  %272 = vmatprep.subr.mxu0 0.0
  %273 = vmatpush1.msra.mxu0 %v243
  %274 = vmatprep.subr.mxu0 0.0
  %275 = vmatpush1.msra.mxu0 %v244
  %276 = vmatprep.subr.mxu0 0.0
  %277 = vmatpush1.msra.mxu0 %v245
  %278 = vmatprep.subr.mxu0 0.0
  %279 = vmatpush1.msra.mxu0 0.0
  %280 = vmatprep.subr.mxu0 0.0
  %281 = vmatpush1.msra.mxu0 0.0
  %282 = vmatprep.subr.mxu0 0.0
  %283 = vmatpush1.msra.mxu0 0.0
  %284 = vmatprep.subr.mxu0 0.0
  %285 = vmatpush1.msra.mxu0 0.0
  %286 = vmatprep.subr.mxu0 0.0
  %287 = vmatpush1.msra.mxu0 0.0
  %288 = vmatprep.subr.mxu0 0.0
  %289 = vmatpush1.msra.mxu0 0.0
  %290 = vmatprep.subr.mxu0 0.0
  %291 = vmatpush1.msra.mxu0 0.0
  %292 = vmatprep.subr.mxu0 0.0
  %293 = vmatpush1.msra.mxu0 0.0
  %294 = vmatprep.subr.mxu0 0.0
  %295 = vmatpush1.msra.mxu0 0.0
  %296 = vmatprep.subr.mxu0 0.0
  %297 = vmatpush1.msra.mxu0 0.0
  %298 = vmatprep.subr.mxu0 0.0
  %299 = vmatpush1.msra.mxu0 0.0
  %300 = vmatprep.subr.mxu0 0.0
  %301 = vmatpush1.msra.mxu0 0.0
  %302 = vmatprep.subr.mxu0 0.0
  %303 = vmatpush1.msra.mxu0 0.0
  %304 = vmatprep.subr.mxu0 0.0
  %305 = vmatpush1.msra.mxu0 0.0
  %306 = vmatprep.subr.mxu0 0.0
  %307 = vmatpush1.msra.mxu0 0.0
  %308 = vmatprep.subr.mxu0 0.0
  %309 = vmatpush1.msra.mxu0 0.0
  %310 = vmatprep.subr.mxu0 0.0
  %311 = vmatpush1.msra.mxu0 0.0
  %312 = vmatprep.subr.mxu0 0.0
  %313 = vmatpush1.msra.mxu0 0.0
  %314 = vmatprep.subr.mxu0 0.0
  %315 = vmatpush1.msra.mxu0 0.0
  %316 = vmatprep.subr.mxu0 0.0
  %317 = vmatpush1.msra.mxu0 0.0
  %318 = vmatprep.subr.mxu0 0.0
  %319 = vmatpush1.msra.mxu0 0.0
  %320 = vmatprep.subr.mxu0 0.0
  %321 = vmatpush1.msra.mxu0 0.0
  %322 = vmatprep.subr.mxu0 0.0
  %323 = vmatpush1.msra.mxu0 0.0
  %324 = vmatprep.subr.mxu0 0.0
  %325 = vmatpush1.msra.mxu0 0.0
  %326 = vmatprep.mubr.f32.mxu0 0.0
  %327 = vmatmul.mubr.f32.gmra.mrb[0].mxu0 %v254
  %v328 = vpop.f32.mrb[0].mxu0
  %v329 = vadd.f32 0.0, %v328
  %v330 = vpop.f32.mrb[0].mxu0
  %331 = vmatprep.mubr.f32.mxu0 0.0
  %332 = vmatmul.mubr.f32.gmra.mrb[0].mxu0 %v256
  %v333 = vpop.f32.mrb[0].mxu0
  %v334 = vadd.f32 0.0, %v333
  %v335 = vpop.f32.mrb[0].mxu0
  %336 = vmatprep.mubr.f32.mxu0 0.0
  %337 = vmatmul.mubr.f32.gmra.mrb[0].mxu0 %v258
  %v338 = vpop.f32.mrb[0].mxu0
  %v339 = vadd.f32 0.0, %v338
  %v340 = vpop.f32.mrb[0].mxu0
  %341 = vmatprep.mubr.f32.mxu0 0.0
  %342 = vmatmul.mubr.f32.gmra.mrb[0].mxu0 %v260
  %v343 = vpop.f32.mrb[0].mxu0
  %v344 = vadd.f32 0.0, %v343
  %v345 = vpop.f32.mrb[0].mxu0
  %346 = vdwg.mxu0
  %v347 = vadd.f32 %v219, %v329
  %v348 = vadd.f32 %v224, %v334
  %v349 = vadd.f32 %v229, %v339
  %v350 = vadd.f32 %v234, %v344
  %v351 = vlaneseq
  %v352 = vshrl.u32 %v351, 7
  %v353 = vadd.s32 %v352, 8
  %v354 = vadd.s32 %v352, 16
  %v355 = vadd.s32 %v352, 24
  %vm356 = vcmp.lt.s32.totalorder %v352, 14
  %vm357 = vcmp.lt.s32.totalorder %v353, 14
  %vm358 = vcmp.lt.s32.totalorder %v354, 14
  %vm359 = vcmp.lt.s32.totalorder %v355, 14
  %vm360 = vcmp.ge.s32.totalorder %v352, 16
  %vm361 = vcmp.ge.s32.totalorder %v353, 16
  %vm362 = vcmp.ge.s32.totalorder %v354, 16
  %vm363 = vcmp.ge.s32.totalorder %v355, 16
  %vm364 = vcmp.lt.s32.totalorder %v352, 30
  %vm365 = vcmp.lt.s32.totalorder %v353, 30
  %vm366 = vcmp.lt.s32.totalorder %v354, 30
  %vm367 = vcmp.lt.s32.totalorder %v355, 30
  %vm368 = vmand %vm360, %vm364
  %vm369 = vmand %vm361, %vm365
  %vm370 = vmand %vm362, %vm366
  %vm371 = vmand %vm363, %vm367
  %vm372 = vmor %vm356, %vm368
  %vm373 = vmor %vm357, %vm369
  %vm374 = vmor %vm358, %vm370
  %vm375 = vmor %vm359, %vm371
  %v376 = vsel %vm372, %v347, 0.0
  %v377 = vsel %vm373, %v348, 0.0
  %v378 = vsel %vm374, %v349, 0.0
  %v379 = vsel %vm375, %v350, 0.0
  %v380 = vadd.s32 %v352, 32
  %v381 = vadd.s32 %v352, 40
  %v382 = vadd.s32 %v352, 48
  %v383 = vadd.s32 %v352, 56
  %v384 = vadd.s32 %v352, 64
  %v385 = vadd.s32 %v352, 72
  %v386 = vadd.s32 %v352, 80
  %v387 = vadd.s32 %v352, 88
  %v388 = vadd.s32 %v352, 96
  %v389 = vadd.s32 %v352, 104
  %v390 = vlaneseq
  %v391 = vand.u32 %v390, 127
  %v392 = vand.u32 %v352, 7
  %v393 = vand.u32 %v353, 7
  %v394 = vand.u32 %v354, 7
  %v395 = vand.u32 %v355, 7
  %v396 = vand.u32 %v380, 7
  %v397 = vand.u32 %v381, 7
  %v398 = vand.u32 %v382, 7
  %v399 = vand.u32 %v383, 7
  %v400 = vand.u32 %v384, 7
  %v401 = vand.u32 %v385, 7
  %v402 = vand.u32 %v386, 7
  %v403 = vand.u32 %v387, 7
  %v404 = vand.u32 %v388, 7
  %v405 = vand.u32 %v389, 7
  %vm406 = vcmp.eq.s32.totalorder %v392, %v391
  %vm407 = vcmp.eq.s32.totalorder %v393, %v391
  %vm408 = vcmp.eq.s32.totalorder %v394, %v391
  %vm409 = vcmp.eq.s32.totalorder %v395, %v391
  %vm410 = vcmp.eq.s32.totalorder %v396, %v391
  %vm411 = vcmp.eq.s32.totalorder %v397, %v391
  %vm412 = vcmp.eq.s32.totalorder %v398, %v391
  %vm413 = vcmp.eq.s32.totalorder %v399, %v391
  %vm414 = vcmp.eq.s32.totalorder %v400, %v391
  %vm415 = vcmp.eq.s32.totalorder %v401, %v391
  %vm416 = vcmp.eq.s32.totalorder %v402, %v391
  %vm417 = vcmp.eq.s32.totalorder %v403, %v391
  %vm418 = vcmp.eq.s32.totalorder %v404, %v391
  %vm419 = vcmp.eq.s32.totalorder %v405, %v391
  %v420 = vsel %vm406, 1, 0
  %v421 = vsel %vm407, 1, 0
  %v422 = vsel %vm408, 1, 0
  %v423 = vsel %vm409, 1, 0
  %v424 = vsel %vm410, 1, 0
  %v425 = vsel %vm411, 1, 0
  %v426 = vsel %vm412, 1, 0
  %v427 = vsel %vm413, 1, 0
  %v428 = vsel %vm414, 1, 0
  %v429 = vsel %vm415, 1, 0
  %v430 = vsel %vm416, 1, 0
  %v431 = vsel %vm417, 1, 0
  %v432 = vsel %vm418, 1, 0
  %v433 = vsel %vm419, 1, 0
  %v434 = vcvt.s32.f32 %v420
  %v435 = vcvt.s32.f32 %v421
  %v436 = vcvt.s32.f32 %v422
  %v437 = vcvt.s32.f32 %v423
  %v438 = vcvt.s32.f32 %v424
  %v439 = vcvt.s32.f32 %v425
  %v440 = vcvt.s32.f32 %v426
  %v441 = vcvt.s32.f32 %v427
  %v442 = vcvt.s32.f32 %v428
  %v443 = vcvt.s32.f32 %v429
  %v444 = vcvt.s32.f32 %v430
  %v445 = vcvt.s32.f32 %v431
  %v446 = vcvt.s32.f32 %v432
  %v447 = vcvt.s32.f32 %v433
  %vm448 = vcmask 244736
  %v450 = vsel %vm448, 1.0, 0
  %v453 = vsel %vm246, %v379, 0
  %455 = vmatprep.subr.mxu0 0.0
  %456 = vmatpush1.msra.mxu0 %v376
  %457 = vmatprep.subr.mxu0 0.0
  %458 = vmatpush1.msra.mxu0 %v377
  %459 = vmatprep.subr.mxu0 0.0
  %460 = vmatpush1.msra.mxu0 %v378
  %461 = vmatprep.subr.mxu0 0.0
  %462 = vmatpush1.msra.mxu0 %v453
  %463 = vmatprep.subr.mxu0 0.0
  %464 = vmatpush1.msra.mxu0 0.0
  %465 = vmatprep.subr.mxu0 0.0
  %466 = vmatpush1.msra.mxu0 0.0
  %467 = vmatprep.subr.mxu0 0.0
  %468 = vmatpush1.msra.mxu0 0.0
  %469 = vmatprep.subr.mxu0 0.0
  %470 = vmatpush1.msra.mxu0 0.0
  %471 = vmatprep.subr.mxu0 0.0
  %472 = vmatpush1.msra.mxu0 0.0
  %473 = vmatprep.subr.mxu0 0.0
  %474 = vmatpush1.msra.mxu0 0.0
  %475 = vmatprep.subr.mxu0 0.0
  %476 = vmatpush1.msra.mxu0 0.0
  %477 = vmatprep.subr.mxu0 0.0
  %478 = vmatpush1.msra.mxu0 0.0
  %479 = vmatprep.subr.mxu0 0.0
  %480 = vmatpush1.msra.mxu0 0.0
  %481 = vmatprep.subr.mxu0 0.0
  %482 = vmatpush1.msra.mxu0 0.0
  %483 = vmatprep.subr.mxu0 0.0
  %484 = vmatpush1.msra.mxu0 0.0
  %485 = vmatprep.subr.mxu0 0.0
  %486 = vmatpush1.msra.mxu0 0.0
  %487 = vmatprep.subr.mxu0 0.0
  %488 = vmatpush1.msra.mxu0 0.0
  %489 = vmatprep.subr.mxu0 0.0
  %490 = vmatpush1.msra.mxu0 0.0
  %491 = vmatprep.subr.mxu0 0.0
  %492 = vmatpush1.msra.mxu0 0.0
  %493 = vmatprep.subr.mxu0 0.0
  %494 = vmatpush1.msra.mxu0 0.0
  %495 = vmatprep.subr.mxu0 0.0
  %496 = vmatpush1.msra.mxu0 0.0
  %497 = vmatprep.subr.mxu0 0.0
  %498 = vmatpush1.msra.mxu0 0.0
  %499 = vmatprep.subr.mxu0 0.0
  %500 = vmatpush1.msra.mxu0 0.0
  %501 = vmatprep.subr.mxu0 0.0
  %502 = vmatpush1.msra.mxu0 0.0
  %503 = vmatprep.subr.mxu0 0.0
  %504 = vmatpush1.msra.mxu0 0.0
  %505 = vmatprep.subr.mxu0 0.0
  %506 = vmatpush1.msra.mxu0 0.0
  %507 = vmatprep.subr.mxu0 0.0
  %508 = vmatpush1.msra.mxu0 0.0
  %509 = vmatprep.subr.mxu0 0.0
  %510 = vmatpush1.msra.mxu0 0.0
  %511 = vmatprep.subr.mxu0 0.0
  %512 = vmatpush1.msra.mxu0 0.0
  %513 = vmatprep.subr.mxu0 0.0
  %514 = vmatpush1.msra.mxu0 0.0
  %515 = vmatprep.subr.mxu0 0.0
  %516 = vmatpush1.msra.mxu0 0.0
  %517 = vmatprep.subr.mxu0 0.0
  %518 = vmatpush1.msra.mxu0 0.0
  %519 = vmatprep.mubr.f32.mxu0 0.0
  %520 = vmatmul.mubr.f32.gmra.mrb[0].mxu0 %v450
  %v521 = vpop.f32.mrb[0].mxu0
  %v522 = vadd.f32 0.0, %v521
  %v523 = vpop.f32.mrb[0].mxu0
  %524 = vdwg.mxu0
  %vm525 = vcmask 916480
  %v527 = vsel %vm525, %v522, 0
  %529 = vmatprep.subr.mxu0 0.0
  %530 = vmatpush1.msra.mxu0 %v434
  %531 = vmatprep.subr.mxu0 0.0
  %532 = vmatpush1.msra.mxu0 %v435
  %533 = vmatprep.subr.mxu0 0.0
  %534 = vmatpush1.msra.mxu0 %v436
  %535 = vmatprep.subr.mxu0 0.0
  %536 = vmatpush1.msra.mxu0 %v437
  %537 = vmatprep.subr.mxu0 0.0
  %538 = vmatpush1.msra.mxu0 %v438
  %539 = vmatprep.subr.mxu0 0.0
  %540 = vmatpush1.msra.mxu0 %v439
  %541 = vmatprep.subr.mxu0 0.0
  %542 = vmatpush1.msra.mxu0 %v440
  %543 = vmatprep.subr.mxu0 0.0
  %544 = vmatpush1.msra.mxu0 %v441
  %545 = vmatprep.subr.mxu0 0.0
  %546 = vmatpush1.msra.mxu0 %v442
  %547 = vmatprep.subr.mxu0 0.0
  %548 = vmatpush1.msra.mxu0 %v443
  %549 = vmatprep.subr.mxu0 0.0
  %550 = vmatpush1.msra.mxu0 %v444
  %551 = vmatprep.subr.mxu0 0.0
  %552 = vmatpush1.msra.mxu0 %v445
  %553 = vmatprep.subr.mxu0 0.0
  %554 = vmatpush1.msra.mxu0 %v446
  %555 = vmatprep.subr.mxu0 0.0
  %556 = vmatpush1.msra.mxu0 %v447
  %557 = vmatprep.subr.mxu0 0.0
  %558 = vmatpush1.msra.mxu0 0.0
  %559 = vmatprep.subr.mxu0 0.0
  %560 = vmatpush1.msra.mxu0 0.0
  %561 = vmatprep.subr.mxu0 0.0
  %562 = vmatpush1.msra.mxu0 0.0
  %563 = vmatprep.subr.mxu0 0.0
  %564 = vmatpush1.msra.mxu0 0.0
  %565 = vmatprep.subr.mxu0 0.0
  %566 = vmatpush1.msra.mxu0 0.0
  %567 = vmatprep.subr.mxu0 0.0
  %568 = vmatpush1.msra.mxu0 0.0
  %569 = vmatprep.subr.mxu0 0.0
  %570 = vmatpush1.msra.mxu0 0.0
  %571 = vmatprep.subr.mxu0 0.0
  %572 = vmatpush1.msra.mxu0 0.0
  %573 = vmatprep.subr.mxu0 0.0
  %574 = vmatpush1.msra.mxu0 0.0
  %575 = vmatprep.subr.mxu0 0.0
  %576 = vmatpush1.msra.mxu0 0.0
  %577 = vmatprep.subr.mxu0 0.0
  %578 = vmatpush1.msra.mxu0 0.0
  %579 = vmatprep.subr.mxu0 0.0
  %580 = vmatpush1.msra.mxu0 0.0
  %581 = vmatprep.subr.mxu0 0.0
  %582 = vmatpush1.msra.mxu0 0.0
  %583 = vmatprep.subr.mxu0 0.0
  %584 = vmatpush1.msra.mxu0 0.0
  %585 = vmatprep.subr.mxu0 0.0
  %586 = vmatpush1.msra.mxu0 0.0
  %587 = vmatprep.subr.mxu0 0.0
  %588 = vmatpush1.msra.mxu0 0.0
  %589 = vmatprep.subr.mxu0 0.0
  %590 = vmatpush1.msra.mxu0 0.0
  %591 = vmatprep.subr.mxu0 0.0
  %592 = vmatpush1.msra.mxu0 0.0
  %593 = vmatprep.mubr.f32.mxu0 0.0
  %594 = vmatmul.mubr.f32.gmra.mrb[0].mxu0 %v527
  %v595 = vpop.f32.mrb[0].mxu0
  %v596 = vadd.f32 0.0, %v595
  %v597 = vpop.f32.mrb[0].mxu0
  %598 = vdwg.mxu0
  %v599 = vmul.f32 %v376, %v376
  %v600 = vmul.f32 %v377, %v377
  %v601 = vmul.f32 %v378, %v378
  %v602 = vmul.f32 %v379, %v379
  %v604 = vsel %vm246, %v602, 0
  %606 = vmatprep.subr.mxu0 0.0
  %607 = vmatpush1.msra.mxu0 %v599
  %608 = vmatprep.subr.mxu0 0.0
  %609 = vmatpush1.msra.mxu0 %v600
  %610 = vmatprep.subr.mxu0 0.0
  %611 = vmatpush1.msra.mxu0 %v601
  %612 = vmatprep.subr.mxu0 0.0
  %613 = vmatpush1.msra.mxu0 %v604
  %614 = vmatprep.subr.mxu0 0.0
  %615 = vmatpush1.msra.mxu0 0.0
  %616 = vmatprep.subr.mxu0 0.0
  %617 = vmatpush1.msra.mxu0 0.0
  %618 = vmatprep.subr.mxu0 0.0
  %619 = vmatpush1.msra.mxu0 0.0
  %620 = vmatprep.subr.mxu0 0.0
  %621 = vmatpush1.msra.mxu0 0.0
  %622 = vmatprep.subr.mxu0 0.0
  %623 = vmatpush1.msra.mxu0 0.0
  %624 = vmatprep.subr.mxu0 0.0
  %625 = vmatpush1.msra.mxu0 0.0
  %626 = vmatprep.subr.mxu0 0.0
  %627 = vmatpush1.msra.mxu0 0.0
  %628 = vmatprep.subr.mxu0 0.0
  %629 = vmatpush1.msra.mxu0 0.0
  %630 = vmatprep.subr.mxu0 0.0
  %631 = vmatpush1.msra.mxu0 0.0
  %632 = vmatprep.subr.mxu0 0.0
  %633 = vmatpush1.msra.mxu0 0.0
  %634 = vmatprep.subr.mxu0 0.0
  %635 = vmatpush1.msra.mxu0 0.0
  %636 = vmatprep.subr.mxu0 0.0
  %637 = vmatpush1.msra.mxu0 0.0
  %638 = vmatprep.subr.mxu0 0.0
  %639 = vmatpush1.msra.mxu0 0.0
  %640 = vmatprep.subr.mxu0 0.0
  %641 = vmatpush1.msra.mxu0 0.0
  %642 = vmatprep.subr.mxu0 0.0
  %643 = vmatpush1.msra.mxu0 0.0
  %644 = vmatprep.subr.mxu0 0.0
  %645 = vmatpush1.msra.mxu0 0.0
  %646 = vmatprep.subr.mxu0 0.0
  %647 = vmatpush1.msra.mxu0 0.0
  %648 = vmatprep.subr.mxu0 0.0
  %649 = vmatpush1.msra.mxu0 0.0
  %650 = vmatprep.subr.mxu0 0.0
  %651 = vmatpush1.msra.mxu0 0.0
  %652 = vmatprep.subr.mxu0 0.0
  %653 = vmatpush1.msra.mxu0 0.0
  %654 = vmatprep.subr.mxu0 0.0
  %655 = vmatpush1.msra.mxu0 0.0
  %656 = vmatprep.subr.mxu0 0.0
  %657 = vmatpush1.msra.mxu0 0.0
  %658 = vmatprep.subr.mxu0 0.0
  %659 = vmatpush1.msra.mxu0 0.0
  %660 = vmatprep.subr.mxu0 0.0
  %661 = vmatpush1.msra.mxu0 0.0
  %662 = vmatprep.subr.mxu0 0.0
  %663 = vmatpush1.msra.mxu0 0.0
  %664 = vmatprep.subr.mxu0 0.0
  %665 = vmatpush1.msra.mxu0 0.0
  %666 = vmatprep.subr.mxu0 0.0
  %667 = vmatpush1.msra.mxu0 0.0
  %668 = vmatprep.subr.mxu0 0.0
  %669 = vmatpush1.msra.mxu0 0.0
  %670 = vmatprep.mubr.f32.mxu0 0.0
  %671 = vmatmul.mubr.f32.gmra.mrb[0].mxu0 %v450
  %v672 = vpop.f32.mrb[0].mxu0
  %v673 = vadd.f32 0.0, %v672
  %v674 = vpop.f32.mrb[0].mxu0
  %675 = vdwg.mxu0
  %v677 = vsel %vm525, %v673, 0
  %679 = vmatprep.subr.mxu0 0.0
  %680 = vmatpush1.msra.mxu0 %v434
  %681 = vmatprep.subr.mxu0 0.0
  %682 = vmatpush1.msra.mxu0 %v435
  %683 = vmatprep.subr.mxu0 0.0
  %684 = vmatpush1.msra.mxu0 %v436
  %685 = vmatprep.subr.mxu0 0.0
  %686 = vmatpush1.msra.mxu0 %v437
  %687 = vmatprep.subr.mxu0 0.0
  %688 = vmatpush1.msra.mxu0 %v438
  %689 = vmatprep.subr.mxu0 0.0
  %690 = vmatpush1.msra.mxu0 %v439
  %691 = vmatprep.subr.mxu0 0.0
  %692 = vmatpush1.msra.mxu0 %v440
  %693 = vmatprep.subr.mxu0 0.0
  %694 = vmatpush1.msra.mxu0 %v441
  %695 = vmatprep.subr.mxu0 0.0
  %696 = vmatpush1.msra.mxu0 %v442
  %697 = vmatprep.subr.mxu0 0.0
  %698 = vmatpush1.msra.mxu0 %v443
  %699 = vmatprep.subr.mxu0 0.0
  %700 = vmatpush1.msra.mxu0 %v444
  %701 = vmatprep.subr.mxu0 0.0
  %702 = vmatpush1.msra.mxu0 %v445
  %703 = vmatprep.subr.mxu0 0.0
  %704 = vmatpush1.msra.mxu0 %v446
  %705 = vmatprep.subr.mxu0 0.0
  %706 = vmatpush1.msra.mxu0 %v447
  %707 = vmatprep.subr.mxu0 0.0
  %708 = vmatpush1.msra.mxu0 0.0
  %709 = vmatprep.subr.mxu0 0.0
  %710 = vmatpush1.msra.mxu0 0.0
  %711 = vmatprep.subr.mxu0 0.0
  %712 = vmatpush1.msra.mxu0 0.0
  %713 = vmatprep.subr.mxu0 0.0
  %714 = vmatpush1.msra.mxu0 0.0
  %715 = vmatprep.subr.mxu0 0.0
  %716 = vmatpush1.msra.mxu0 0.0
  %717 = vmatprep.subr.mxu0 0.0
  %718 = vmatpush1.msra.mxu0 0.0
  %719 = vmatprep.subr.mxu0 0.0
  %720 = vmatpush1.msra.mxu0 0.0
  %721 = vmatprep.subr.mxu0 0.0
  %722 = vmatpush1.msra.mxu0 0.0
  %723 = vmatprep.subr.mxu0 0.0
  %724 = vmatpush1.msra.mxu0 0.0
  %725 = vmatprep.subr.mxu0 0.0
  %726 = vmatpush1.msra.mxu0 0.0
  %727 = vmatprep.subr.mxu0 0.0
  %728 = vmatpush1.msra.mxu0 0.0
  %729 = vmatprep.subr.mxu0 0.0
  %730 = vmatpush1.msra.mxu0 0.0
  %731 = vmatprep.subr.mxu0 0.0
  %732 = vmatpush1.msra.mxu0 0.0
  %733 = vmatprep.subr.mxu0 0.0
  %734 = vmatpush1.msra.mxu0 0.0
  %735 = vmatprep.subr.mxu0 0.0
  %736 = vmatpush1.msra.mxu0 0.0
  %737 = vmatprep.subr.mxu0 0.0
  %738 = vmatpush1.msra.mxu0 0.0
  %739 = vmatprep.subr.mxu0 0.0
  %740 = vmatpush1.msra.mxu0 0.0
  %741 = vmatprep.subr.mxu0 0.0
  %742 = vmatpush1.msra.mxu0 0.0
  %743 = vmatprep.mubr.f32.mxu0 0.0
  %744 = vmatmul.mubr.f32.gmra.mrb[0].mxu0 %v677
  %v745 = vpop.f32.mrb[0].mxu0
  %v746 = vadd.f32 0.0, %v745
  %v747 = vpop.f32.mrb[0].mxu0
  %748 = vdwg.mxu0
  %v749 = vmul.f32 %v596, 0.0025510204
  %v750 = vmul.f32 %v746, 0.0025510204
  %v751 = vmul.f32 %v749, %v749
  %v752 = vsub.f32 %v750, %v751
  %v753 = vmax.f32 %v752, 0.0
  %v754 = vld [vmem:[%s3] sm:$0x1]
  %v755 = vadd.f32 %v753, 1e-05
  %v756 = vrsqrt.pop %v755
  %v757 = vmul.f32 %v754, %v756
  %v758 = vand.u32 %v391, 7
  %vm759 = vcmp.eq.s32.totalorder %v758, %v352
  %v760 = vsel %vm759, 1, 0
  %v761 = vcvt.s32.f32 %v760
  %vm762 = vcmask 64512
  %v764 = vsel %vm762, %v757, 0
  %766 = vmatprep.subr.mxu0 0.0
  %767 = vmatpush1.msra.mxu0 %v761
  %768 = vmatprep.subr.mxu0 0.0
  %769 = vmatpush1.msra.mxu0 0.0
  %770 = vmatprep.subr.mxu0 0.0
  %771 = vmatpush1.msra.mxu0 0.0
  %772 = vmatprep.subr.mxu0 0.0
  %773 = vmatpush1.msra.mxu0 0.0
  %774 = vmatprep.subr.mxu0 0.0
  %775 = vmatpush1.msra.mxu0 0.0
  %776 = vmatprep.subr.mxu0 0.0
  %777 = vmatpush1.msra.mxu0 0.0
  %778 = vmatprep.subr.mxu0 0.0
  %779 = vmatpush1.msra.mxu0 0.0
  %780 = vmatprep.subr.mxu0 0.0
  %781 = vmatpush1.msra.mxu0 0.0
  %782 = vmatprep.subr.mxu0 0.0
  %783 = vmatpush1.msra.mxu0 0.0
  %784 = vmatprep.subr.mxu0 0.0
  %785 = vmatpush1.msra.mxu0 0.0
  %786 = vmatprep.subr.mxu0 0.0
  %787 = vmatpush1.msra.mxu0 0.0
  %788 = vmatprep.subr.mxu0 0.0
  %789 = vmatpush1.msra.mxu0 0.0
  %790 = vmatprep.subr.mxu0 0.0
  %791 = vmatpush1.msra.mxu0 0.0
  %792 = vmatprep.subr.mxu0 0.0
  %793 = vmatpush1.msra.mxu0 0.0
  %794 = vmatprep.subr.mxu0 0.0
  %795 = vmatpush1.msra.mxu0 0.0
  %796 = vmatprep.subr.mxu0 0.0
  %797 = vmatpush1.msra.mxu0 0.0
  %798 = vmatprep.subr.mxu0 0.0
  %799 = vmatpush1.msra.mxu0 0.0
  %800 = vmatprep.subr.mxu0 0.0
  %801 = vmatpush1.msra.mxu0 0.0
  %802 = vmatprep.subr.mxu0 0.0
  %803 = vmatpush1.msra.mxu0 0.0
  %804 = vmatprep.subr.mxu0 0.0
  %805 = vmatpush1.msra.mxu0 0.0
  %806 = vmatprep.subr.mxu0 0.0
  %807 = vmatpush1.msra.mxu0 0.0
  %808 = vmatprep.subr.mxu0 0.0
  %809 = vmatpush1.msra.mxu0 0.0
  %810 = vmatprep.subr.mxu0 0.0
  %811 = vmatpush1.msra.mxu0 0.0
  %812 = vmatprep.subr.mxu0 0.0
  %813 = vmatpush1.msra.mxu0 0.0
  %814 = vmatprep.subr.mxu0 0.0
  %815 = vmatpush1.msra.mxu0 0.0
  %816 = vmatprep.subr.mxu0 0.0
  %817 = vmatpush1.msra.mxu0 0.0
  %818 = vmatprep.subr.mxu0 0.0
  %819 = vmatpush1.msra.mxu0 0.0
  %820 = vmatprep.subr.mxu0 0.0
  %821 = vmatpush1.msra.mxu0 0.0
  %822 = vmatprep.subr.mxu0 0.0
  %823 = vmatpush1.msra.mxu0 0.0
  %824 = vmatprep.subr.mxu0 0.0
  %825 = vmatpush1.msra.mxu0 0.0
  %826 = vmatprep.subr.mxu0 0.0
  %827 = vmatpush1.msra.mxu0 0.0
  %828 = vmatprep.subr.mxu0 0.0
  %829 = vmatpush1.msra.mxu0 0.0
  %830 = vmatprep.mubr.f32.mxu0 0.0
  %831 = vmatmul.mubr.f32.gmra.mrb[0].mxu0 %v764
  %v832 = vpop.f32.mrb[0].mxu0
  %v833 = vadd.f32 0.0, %v832
  %v834 = vpop.f32.mrb[0].mxu0
  %835 = vdwg.mxu0
  %v836 = vlaneseq
  %v837 = vshrl.u32 %v836, 7
  %v838 = vsub.s32 0, %v837
  %v839 = vrot.slane %v833, %v838
  %v840 = vmul.f32 %v347, %v839
  %v841 = vmul.f32 %v348, %v839
  %v842 = vmul.f32 %v349, %v839
  %v843 = vmul.f32 %v350, %v839
  %v844 = vld [vmem:[%s2] sm:$0xff]
  %v845 = vld [vmem:[%s2 + $0x8] sm:$0xff]
  %v846 = vld [vmem:[%s2 + $0x10] sm:$0xff]
  %v847 = vld [vmem:[%s2 + $0x18] sm:$0xff]
  %v848 = vld [vmem:[%s2 + $0x20] sm:$0xff]
  %v849 = vld [vmem:[%s2 + $0x28] sm:$0xff]
  %v850 = vld [vmem:[%s2 + $0x30] sm:$0xff]
  %v851 = vld [vmem:[%s2 + $0x38] sm:$0xff]
  %v852 = vld [vmem:[%s2 + $0x40] sm:$0xff]
  %v853 = vld [vmem:[%s2 + $0x48] sm:$0xff]
  %v854 = vld [vmem:[%s2 + $0x50] sm:$0xff]
  %v855 = vld [vmem:[%s2 + $0x58] sm:$0xff]
  %v856 = vld [vmem:[%s2 + $0x60] sm:$0xff]
  %v857 = vld [vmem:[%s2 + $0x68] sm:$0xff]
  %v858 = vld [vmem:[%s2 + $0x70] sm:$0xff]
  %v859 = vld [vmem:[%s2 + $0x78] sm:$0xff]
  %v860 = vld [vmem:[%s2 + $0x80] sm:$0xff]
  %v861 = vld [vmem:[%s2 + $0x88] sm:$0xff]
  %v862 = vld [vmem:[%s2 + $0x90] sm:$0xff]
  %v863 = vld [vmem:[%s2 + $0x98] sm:$0xff]
  %v864 = vld [vmem:[%s2 + $0xa0] sm:$0xff]
  %v865 = vld [vmem:[%s2 + $0xa8] sm:$0xff]
  %v866 = vld [vmem:[%s2 + $0xb0] sm:$0xff]
  %v867 = vld [vmem:[%s2 + $0xb8] sm:$0xff]
  %v868 = vld [vmem:[%s2 + $0xc0] sm:$0xff]
  %v869 = vld [vmem:[%s2 + $0xc8] sm:$0xff]
  %v870 = vld [vmem:[%s2 + $0xd0] sm:$0xff]
  %v871 = vld [vmem:[%s2 + $0xd8] sm:$0xff]
  %s872 = scalar_lea.vmem %s2, 224
  %v873 = vld [vmem:[%s872] sm:$0xff]
  %v874 = vld [vmem:[%s872 + $0x8] sm:$0xff]
  %v875 = vld [vmem:[%s872 + $0x10] sm:$0xff]
  %v876 = vld [vmem:[%s872 + $0x18] sm:$0xff]
  %v877 = vld [vmem:[%s872 + $0x20] sm:$0xff]
  %v878 = vld [vmem:[%s872 + $0x28] sm:$0xff]
  %v879 = vld [vmem:[%s872 + $0x30] sm:$0xff]
  %v880 = vld [vmem:[%s872 + $0x38] sm:$0xff]
  %v881 = vld [vmem:[%s872 + $0x40] sm:$0xff]
  %v882 = vld [vmem:[%s872 + $0x48] sm:$0xff]
  %v883 = vld [vmem:[%s872 + $0x50] sm:$0xff]
  %v884 = vld [vmem:[%s872 + $0x58] sm:$0xff]
  %v885 = vld [vmem:[%s872 + $0x60] sm:$0xff]
  %v886 = vld [vmem:[%s872 + $0x68] sm:$0xff]
  %v887 = vld [vmem:[%s872 + $0x70] sm:$0xff]
  %v888 = vld [vmem:[%s872 + $0x78] sm:$0xff]
  %v889 = vld [vmem:[%s872 + $0x80] sm:$0xff]
  %v890 = vld [vmem:[%s872 + $0x88] sm:$0xff]
  %v891 = vld [vmem:[%s872 + $0x90] sm:$0xff]
  %v892 = vld [vmem:[%s872 + $0x98] sm:$0xff]
  %v893 = vld [vmem:[%s872 + $0xa0] sm:$0xff]
  %v894 = vld [vmem:[%s872 + $0xa8] sm:$0xff]
  %v895 = vld [vmem:[%s872 + $0xb0] sm:$0xff]
  %v896 = vld [vmem:[%s872 + $0xb8] sm:$0xff]
  %v897 = vld [vmem:[%s872 + $0xc0] sm:$0xff]
  %v898 = vld [vmem:[%s872 + $0xc8] sm:$0xff]
  %v899 = vld [vmem:[%s872 + $0xd0] sm:$0xff]
  %v900 = vld [vmem:[%s872 + $0xd8] sm:$0xff]
  %v905 = vrot.slane %v840, 1
  %v906 = vrot.slane %v841, 1
  %v907 = vsel %vm42, %v905, %v906
  %v908 = vrot.slane %v842, 1
  %v909 = vsel %vm42, %v906, %v908
  %v910 = vrot.slane %v843, 1
  %v911 = vsel %vm42, %v908, %v910
  %v912 = vsel %vm525, %v907, 0
  %v914 = vsel %vm525, %v909, 0
  %v916 = vsel %vm525, %v911, 0
  %v918 = vsel %vm525, %v910, 0
  %920 = vmatprep.subr.mxu0 %v874
  %921 = vmatpush1.msra.mxu0 %v873
  %922 = vmatprep.subr.mxu0 %v876
  %923 = vmatpush1.msra.mxu0 %v875
  %924 = vmatprep.subr.mxu0 %v878
  %925 = vmatpush1.msra.mxu0 %v877
  %926 = vmatprep.subr.mxu0 %v880
  %927 = vmatpush1.msra.mxu0 %v879
  %928 = vmatprep.subr.mxu0 %v882
  %929 = vmatpush1.msra.mxu0 %v881
  %930 = vmatprep.subr.mxu0 %v884
  %931 = vmatpush1.msra.mxu0 %v883
  %932 = vmatprep.subr.mxu0 %v886
  %933 = vmatpush1.msra.mxu0 %v885
  %934 = vmatprep.subr.mxu0 %v888
  %935 = vmatpush1.msra.mxu0 %v887
  %936 = vmatprep.subr.mxu0 %v890
  %937 = vmatpush1.msra.mxu0 %v889
  %938 = vmatprep.subr.mxu0 %v892
  %939 = vmatpush1.msra.mxu0 %v891
  %940 = vmatprep.subr.mxu0 %v894
  %941 = vmatpush1.msra.mxu0 %v893
  %942 = vmatprep.subr.mxu0 %v896
  %943 = vmatpush1.msra.mxu0 %v895
  %944 = vmatprep.subr.mxu0 %v898
  %945 = vmatpush1.msra.mxu0 %v897
  %946 = vmatprep.subr.mxu0 %v900
  %947 = vmatpush1.msra.mxu0 %v899
  %948 = vmatprep.subr.mxu0 0.0
  %949 = vmatpush1.msra.mxu0 0.0
  %950 = vmatprep.subr.mxu0 0.0
  %951 = vmatpush1.msra.mxu0 0.0
  %952 = vmatprep.subr.mxu0 0.0
  %953 = vmatpush1.msra.mxu0 0.0
  %954 = vmatprep.subr.mxu0 0.0
  %955 = vmatpush1.msra.mxu0 0.0
  %956 = vmatprep.subr.mxu0 0.0
  %957 = vmatpush1.msra.mxu0 0.0
  %958 = vmatprep.subr.mxu0 0.0
  %959 = vmatpush1.msra.mxu0 0.0
  %960 = vmatprep.subr.mxu0 0.0
  %961 = vmatpush1.msra.mxu0 0.0
  %962 = vmatprep.subr.mxu0 0.0
  %963 = vmatpush1.msra.mxu0 0.0
  %964 = vmatprep.subr.mxu0 0.0
  %965 = vmatpush1.msra.mxu0 0.0
  %966 = vmatprep.subr.mxu0 0.0
  %967 = vmatpush1.msra.mxu0 0.0
  %968 = vmatprep.subr.mxu0 0.0
  %969 = vmatpush1.msra.mxu0 0.0
  %970 = vmatprep.subr.mxu0 0.0
  %971 = vmatpush1.msra.mxu0 0.0
  %972 = vmatprep.subr.mxu0 0.0
  %973 = vmatpush1.msra.mxu0 0.0
  %974 = vmatprep.subr.mxu0 0.0
  %975 = vmatpush1.msra.mxu0 0.0
  %976 = vmatprep.subr.mxu0 0.0
  %977 = vmatpush1.msra.mxu0 0.0
  %978 = vmatprep.subr.mxu0 0.0
  %979 = vmatpush1.msra.mxu0 0.0
  %980 = vmatprep.subr.mxu0 0.0
  %981 = vmatpush1.msra.mxu0 0.0
  %982 = vmatprep.subr.mxu0 0.0
  %983 = vmatpush1.msra.mxu0 0.0
  %984 = vmatprep.mubr.f32.mxu0 0.0
  %985 = vmatmul.mubr.f32.gmra.mrb[0].mxu0 %v912
  %v986 = vpop.f32.mrb[0].mxu0
  %v987 = vadd.f32 0.0, %v986
  %v988 = vpop.f32.mrb[0].mxu0
  %v989 = vadd.f32 0.0, %v988
  %990 = vmatprep.mubr.f32.mxu0 0.0
  %991 = vmatmul.mubr.f32.gmra.mrb[0].mxu0 %v914
  %v992 = vpop.f32.mrb[0].mxu0
  %v993 = vadd.f32 0.0, %v992
  %v994 = vpop.f32.mrb[0].mxu0
  %v995 = vadd.f32 0.0, %v994
  %996 = vmatprep.mubr.f32.mxu0 0.0
  %997 = vmatmul.mubr.f32.gmra.mrb[0].mxu0 %v916
  %v998 = vpop.f32.mrb[0].mxu0
  %v999 = vadd.f32 0.0, %v998
  %v1000 = vpop.f32.mrb[0].mxu0
  %v1001 = vadd.f32 0.0, %v1000
  %1002 = vmatprep.mubr.f32.mxu0 0.0
  %1003 = vmatmul.mubr.f32.gmra.mrb[0].mxu0 %v918
  %v1004 = vpop.f32.mrb[0].mxu0
  %v1005 = vadd.f32 0.0, %v1004
  %v1006 = vpop.f32.mrb[0].mxu0
  %v1007 = vadd.f32 0.0, %v1006
  %1008 = vdwg.mxu0
  %v1009 = vsel %vm525, %v840, 0
  %v1011 = vsel %vm525, %v841, 0
  %v1013 = vsel %vm525, %v842, 0
  %v1015 = vsel %vm525, %v843, 0
  %1017 = vmatprep.subr.mxu0 %v845
  %1018 = vmatpush1.msra.mxu0 %v844
  %1019 = vmatprep.subr.mxu0 %v847
  %1020 = vmatpush1.msra.mxu0 %v846
  %1021 = vmatprep.subr.mxu0 %v849
  %1022 = vmatpush1.msra.mxu0 %v848
  %1023 = vmatprep.subr.mxu0 %v851
  %1024 = vmatpush1.msra.mxu0 %v850
  %1025 = vmatprep.subr.mxu0 %v853
  %1026 = vmatpush1.msra.mxu0 %v852
  %1027 = vmatprep.subr.mxu0 %v855
  %1028 = vmatpush1.msra.mxu0 %v854
  %1029 = vmatprep.subr.mxu0 %v857
  %1030 = vmatpush1.msra.mxu0 %v856
  %1031 = vmatprep.subr.mxu0 %v859
  %1032 = vmatpush1.msra.mxu0 %v858
  %1033 = vmatprep.subr.mxu0 %v861
  %1034 = vmatpush1.msra.mxu0 %v860
  %1035 = vmatprep.subr.mxu0 %v863
  %1036 = vmatpush1.msra.mxu0 %v862
  %1037 = vmatprep.subr.mxu0 %v865
  %1038 = vmatpush1.msra.mxu0 %v864
  %1039 = vmatprep.subr.mxu0 %v867
  %1040 = vmatpush1.msra.mxu0 %v866
  %1041 = vmatprep.subr.mxu0 %v869
  %1042 = vmatpush1.msra.mxu0 %v868
  %1043 = vmatprep.subr.mxu0 %v871
  %1044 = vmatpush1.msra.mxu0 %v870
  %1045 = vmatprep.subr.mxu0 0.0
  %1046 = vmatpush1.msra.mxu0 0.0
  %1047 = vmatprep.subr.mxu0 0.0
  %1048 = vmatpush1.msra.mxu0 0.0
  %1049 = vmatprep.subr.mxu0 0.0
  %1050 = vmatpush1.msra.mxu0 0.0
  %1051 = vmatprep.subr.mxu0 0.0
  %1052 = vmatpush1.msra.mxu0 0.0
  %1053 = vmatprep.subr.mxu0 0.0
  %1054 = vmatpush1.msra.mxu0 0.0
  %1055 = vmatprep.subr.mxu0 0.0
  %1056 = vmatpush1.msra.mxu0 0.0
  %1057 = vmatprep.subr.mxu0 0.0
  %1058 = vmatpush1.msra.mxu0 0.0
  %1059 = vmatprep.subr.mxu0 0.0
  %1060 = vmatpush1.msra.mxu0 0.0
  %1061 = vmatprep.subr.mxu0 0.0
  %1062 = vmatpush1.msra.mxu0 0.0
  %1063 = vmatprep.subr.mxu0 0.0
  %1064 = vmatpush1.msra.mxu0 0.0
  %1065 = vmatprep.subr.mxu0 0.0
  %1066 = vmatpush1.msra.mxu0 0.0
  %1067 = vmatprep.subr.mxu0 0.0
  %1068 = vmatpush1.msra.mxu0 0.0
  %1069 = vmatprep.subr.mxu0 0.0
  %1070 = vmatpush1.msra.mxu0 0.0
  %1071 = vmatprep.subr.mxu0 0.0
  %1072 = vmatpush1.msra.mxu0 0.0
  %1073 = vmatprep.subr.mxu0 0.0
  %1074 = vmatpush1.msra.mxu0 0.0
  %1075 = vmatprep.subr.mxu0 0.0
  %1076 = vmatpush1.msra.mxu0 0.0
  %1077 = vmatprep.subr.mxu0 0.0
  %1078 = vmatpush1.msra.mxu0 0.0
  %1079 = vmatprep.subr.mxu0 0.0
  %1080 = vmatpush1.msra.mxu0 0.0
  %1081 = vmatprep.mubr.f32.mxu0 0.0
  %1082 = vmatmul.mubr.f32.gmra.mrb[0].mxu0 %v1009
  %v1083 = vpop.f32.mrb[0].mxu0
  %v1084 = vadd.f32 %v987, %v1083
  %v1085 = vpop.f32.mrb[0].mxu0
  %v1086 = vadd.f32 %v989, %v1085
  %1087 = vmatprep.mubr.f32.mxu0 0.0
  %1088 = vmatmul.mubr.f32.gmra.mrb[0].mxu0 %v1011
  %v1089 = vpop.f32.mrb[0].mxu0
  %v1090 = vadd.f32 %v993, %v1089
  %v1091 = vpop.f32.mrb[0].mxu0
  %v1092 = vadd.f32 %v995, %v1091
  %1093 = vmatprep.mubr.f32.mxu0 0.0
  %1094 = vmatmul.mubr.f32.gmra.mrb[0].mxu0 %v1013
  %v1095 = vpop.f32.mrb[0].mxu0
  %v1096 = vadd.f32 %v999, %v1095
  %v1097 = vpop.f32.mrb[0].mxu0
  %v1098 = vadd.f32 %v1001, %v1097
  %1099 = vmatprep.mubr.f32.mxu0 0.0
  %1100 = vmatmul.mubr.f32.gmra.mrb[0].mxu0 %v1015
  %v1101 = vpop.f32.mrb[0].mxu0
  %v1102 = vadd.f32 %v1005, %v1101
  %v1103 = vpop.f32.mrb[0].mxu0
  %v1104 = vadd.f32 %v1007, %v1103
  %1105 = vdwg.mxu0
  %s1106 = scalar_lea.vmem %s2, 448
  %v1107 = vld [vmem:[%s1106] sm:$0xff]
  %v1108 = vld [vmem:[%s1106 + $0x8] sm:$0xff]
  %v1109 = vld [vmem:[%s1106 + $0x10] sm:$0xff]
  %v1110 = vld [vmem:[%s1106 + $0x18] sm:$0xff]
  %v1111 = vld [vmem:[%s1106 + $0x20] sm:$0xff]
  %v1112 = vld [vmem:[%s1106 + $0x28] sm:$0xff]
  %v1113 = vld [vmem:[%s1106 + $0x30] sm:$0xff]
  %v1114 = vld [vmem:[%s1106 + $0x38] sm:$0xff]
  %v1115 = vld [vmem:[%s1106 + $0x40] sm:$0xff]
  %v1116 = vld [vmem:[%s1106 + $0x48] sm:$0xff]
  %v1117 = vld [vmem:[%s1106 + $0x50] sm:$0xff]
  %v1118 = vld [vmem:[%s1106 + $0x58] sm:$0xff]
  %v1119 = vld [vmem:[%s1106 + $0x60] sm:$0xff]
  %v1120 = vld [vmem:[%s1106 + $0x68] sm:$0xff]
  %v1121 = vld [vmem:[%s1106 + $0x70] sm:$0xff]
  %v1122 = vld [vmem:[%s1106 + $0x78] sm:$0xff]
  %v1123 = vld [vmem:[%s1106 + $0x80] sm:$0xff]
  %v1124 = vld [vmem:[%s1106 + $0x88] sm:$0xff]
  %v1125 = vld [vmem:[%s1106 + $0x90] sm:$0xff]
  %v1126 = vld [vmem:[%s1106 + $0x98] sm:$0xff]
  %v1127 = vld [vmem:[%s1106 + $0xa0] sm:$0xff]
  %v1128 = vld [vmem:[%s1106 + $0xa8] sm:$0xff]
  %v1129 = vld [vmem:[%s1106 + $0xb0] sm:$0xff]
  %v1130 = vld [vmem:[%s1106 + $0xb8] sm:$0xff]
  %v1131 = vld [vmem:[%s1106 + $0xc0] sm:$0xff]
  %v1132 = vld [vmem:[%s1106 + $0xc8] sm:$0xff]
  %v1133 = vld [vmem:[%s1106 + $0xd0] sm:$0xff]
  %v1134 = vld [vmem:[%s1106 + $0xd8] sm:$0xff]
  %v1135 = vrot.slane %v840, 2
  %v1136 = vrot.slane %v841, 2
  %v1137 = vsel %vm246, %v1135, %v1136
  %v1138 = vrot.slane %v842, 2
  %v1139 = vsel %vm246, %v1136, %v1138
  %v1140 = vrot.slane %v843, 2
  %v1141 = vsel %vm246, %v1138, %v1140
  %v1142 = vsel %vm525, %v1137, 0
  %v1144 = vsel %vm525, %v1139, 0
  %v1146 = vsel %vm525, %v1141, 0
  %v1148 = vsel %vm525, %v1140, 0
  %1150 = vmatprep.subr.mxu0 %v1108
  %1151 = vmatpush1.msra.mxu0 %v1107
  %1152 = vmatprep.subr.mxu0 %v1110
  %1153 = vmatpush1.msra.mxu0 %v1109
  %1154 = vmatprep.subr.mxu0 %v1112
  %1155 = vmatpush1.msra.mxu0 %v1111
  %1156 = vmatprep.subr.mxu0 %v1114
  %1157 = vmatpush1.msra.mxu0 %v1113
  %1158 = vmatprep.subr.mxu0 %v1116
  %1159 = vmatpush1.msra.mxu0 %v1115
  %1160 = vmatprep.subr.mxu0 %v1118
  %1161 = vmatpush1.msra.mxu0 %v1117
  %1162 = vmatprep.subr.mxu0 %v1120
  %1163 = vmatpush1.msra.mxu0 %v1119
  %1164 = vmatprep.subr.mxu0 %v1122
  %1165 = vmatpush1.msra.mxu0 %v1121
  %1166 = vmatprep.subr.mxu0 %v1124
  %1167 = vmatpush1.msra.mxu0 %v1123
  %1168 = vmatprep.subr.mxu0 %v1126
  %1169 = vmatpush1.msra.mxu0 %v1125
  %1170 = vmatprep.subr.mxu0 %v1128
  %1171 = vmatpush1.msra.mxu0 %v1127
  %1172 = vmatprep.subr.mxu0 %v1130
  %1173 = vmatpush1.msra.mxu0 %v1129
  %1174 = vmatprep.subr.mxu0 %v1132
  %1175 = vmatpush1.msra.mxu0 %v1131
  %1176 = vmatprep.subr.mxu0 %v1134
  %1177 = vmatpush1.msra.mxu0 %v1133
  %1178 = vmatprep.subr.mxu0 0.0
  %1179 = vmatpush1.msra.mxu0 0.0
  %1180 = vmatprep.subr.mxu0 0.0
  %1181 = vmatpush1.msra.mxu0 0.0
  %1182 = vmatprep.subr.mxu0 0.0
  %1183 = vmatpush1.msra.mxu0 0.0
  %1184 = vmatprep.subr.mxu0 0.0
  %1185 = vmatpush1.msra.mxu0 0.0
  %1186 = vmatprep.subr.mxu0 0.0
  %1187 = vmatpush1.msra.mxu0 0.0
  %1188 = vmatprep.subr.mxu0 0.0
  %1189 = vmatpush1.msra.mxu0 0.0
  %1190 = vmatprep.subr.mxu0 0.0
  %1191 = vmatpush1.msra.mxu0 0.0
  %1192 = vmatprep.subr.mxu0 0.0
  %1193 = vmatpush1.msra.mxu0 0.0
  %1194 = vmatprep.subr.mxu0 0.0
  %1195 = vmatpush1.msra.mxu0 0.0
  %1196 = vmatprep.subr.mxu0 0.0
  %1197 = vmatpush1.msra.mxu0 0.0
  %1198 = vmatprep.subr.mxu0 0.0
  %1199 = vmatpush1.msra.mxu0 0.0
  %1200 = vmatprep.subr.mxu0 0.0
  %1201 = vmatpush1.msra.mxu0 0.0
  %1202 = vmatprep.subr.mxu0 0.0
  %1203 = vmatpush1.msra.mxu0 0.0
  %1204 = vmatprep.subr.mxu0 0.0
  %1205 = vmatpush1.msra.mxu0 0.0
  %1206 = vmatprep.subr.mxu0 0.0
  %1207 = vmatpush1.msra.mxu0 0.0
  %1208 = vmatprep.subr.mxu0 0.0
  %1209 = vmatpush1.msra.mxu0 0.0
  %1210 = vmatprep.subr.mxu0 0.0
  %1211 = vmatpush1.msra.mxu0 0.0
  %1212 = vmatprep.subr.mxu0 0.0
  %1213 = vmatpush1.msra.mxu0 0.0
  %1214 = vmatprep.mubr.f32.mxu0 0.0
  %1215 = vmatmul.mubr.f32.gmra.mrb[0].mxu0 %v1142
  %v1216 = vpop.f32.mrb[0].mxu0
  %v1217 = vadd.f32 0.0, %v1216
  %v1218 = vpop.f32.mrb[0].mxu0
  %v1219 = vadd.f32 0.0, %v1218
  %1220 = vmatprep.mubr.f32.mxu0 0.0
  %1221 = vmatmul.mubr.f32.gmra.mrb[0].mxu0 %v1144
  %v1222 = vpop.f32.mrb[0].mxu0
  %v1223 = vadd.f32 0.0, %v1222
  %v1224 = vpop.f32.mrb[0].mxu0
  %v1225 = vadd.f32 0.0, %v1224
  %1226 = vmatprep.mubr.f32.mxu0 0.0
  %1227 = vmatmul.mubr.f32.gmra.mrb[0].mxu0 %v1146
  %v1228 = vpop.f32.mrb[0].mxu0
  %v1229 = vadd.f32 0.0, %v1228
  %v1230 = vpop.f32.mrb[0].mxu0
  %v1231 = vadd.f32 0.0, %v1230
  %1232 = vmatprep.mubr.f32.mxu0 0.0
  %1233 = vmatmul.mubr.f32.gmra.mrb[0].mxu0 %v1148
  %v1234 = vpop.f32.mrb[0].mxu0
  %v1235 = vadd.f32 0.0, %v1234
  %v1236 = vpop.f32.mrb[0].mxu0
  %v1237 = vadd.f32 0.0, %v1236
  %1238 = vdwg.mxu0
  %v1239 = vadd.f32 %v1084, %v1217
  %v1240 = vadd.f32 %v1086, %v1219
  %v1241 = vadd.f32 %v1090, %v1223
  %v1242 = vadd.f32 %v1092, %v1225
  %v1243 = vadd.f32 %v1096, %v1229
  %v1244 = vadd.f32 %v1098, %v1231
  %v1245 = vadd.f32 %v1102, %v1235
  %v1246 = vadd.f32 %v1104, %v1237
  %vm1247 = vcmp.lt.s32.totalorder %v352, 12
  %vm1248 = vcmp.lt.s32.totalorder %v353, 12
  %vm1249 = vcmp.lt.s32.totalorder %v354, 12
  %vm1250 = vcmp.lt.s32.totalorder %v355, 12
  %vm1251 = vcmp.lt.s32.totalorder %v352, 28
  %vm1252 = vcmp.lt.s32.totalorder %v353, 28
  %vm1253 = vcmp.lt.s32.totalorder %v354, 28
  %vm1254 = vcmp.lt.s32.totalorder %v355, 28
  %vm1255 = vmand %vm360, %vm1251
  %vm1256 = vmand %vm361, %vm1252
  %vm1257 = vmand %vm362, %vm1253
  %vm1258 = vmand %vm363, %vm1254
  %vm1259 = vmor %vm1247, %vm1255
  %vm1260 = vmor %vm1248, %vm1256
  %vm1261 = vmor %vm1249, %vm1257
  %vm1262 = vmor %vm1250, %vm1258
  %v1263 = vsel %vm1259, %v1239, 0.0
  %v1264 = vsel %vm1259, %v1240, 0.0
  %v1265 = vsel %vm1260, %v1241, 0.0
  %v1266 = vsel %vm1260, %v1242, 0.0
  %v1267 = vsel %vm1261, %v1243, 0.0
  %v1268 = vsel %vm1261, %v1244, 0.0
  %v1269 = vsel %vm1262, %v1245, 0.0
  %v1270 = vsel %vm1262, %v1246, 0.0
  %v1271 = vadd.s32 %v352, 112
  %v1272 = vadd.s32 %v352, 120
  %v1273 = vadd.s32 %v352, 128
  %v1274 = vadd.s32 %v352, 136
  %v1275 = vadd.s32 %v352, 144
  %v1276 = vadd.s32 %v352, 152
  %v1277 = vadd.s32 %v352, 160
  %v1278 = vadd.s32 %v352, 168
  %v1279 = vadd.s32 %v352, 176
  %v1280 = vadd.s32 %v352, 184
  %v1281 = vand.u32 %v352, 15
  %v1282 = vand.u32 %v353, 15
  %v1283 = vand.u32 %v354, 15
  %v1284 = vand.u32 %v355, 15
  %v1285 = vand.u32 %v380, 15
  %v1286 = vand.u32 %v381, 15
  %v1287 = vand.u32 %v382, 15
  %v1288 = vand.u32 %v383, 15
  %v1289 = vand.u32 %v384, 15
  %v1290 = vand.u32 %v385, 15
  %v1291 = vand.u32 %v386, 15
  %v1292 = vand.u32 %v387, 15
  %v1293 = vand.u32 %v388, 15
  %v1294 = vand.u32 %v389, 15
  %v1295 = vand.u32 %v1271, 15
  %v1296 = vand.u32 %v1272, 15
  %v1297 = vand.u32 %v1273, 15
  %v1298 = vand.u32 %v1274, 15
  %v1299 = vand.u32 %v1275, 15
  %v1300 = vand.u32 %v1276, 15
  %v1301 = vand.u32 %v1277, 15
  %v1302 = vand.u32 %v1278, 15
  %v1303 = vand.u32 %v1279, 15
  %v1304 = vand.u32 %v1280, 15
  %vm1305 = vcmp.eq.s32.totalorder %v1281, %v391
  %vm1306 = vcmp.eq.s32.totalorder %v1282, %v391
  %vm1307 = vcmp.eq.s32.totalorder %v1283, %v391
  %vm1308 = vcmp.eq.s32.totalorder %v1284, %v391
  %vm1309 = vcmp.eq.s32.totalorder %v1285, %v391
  %vm1310 = vcmp.eq.s32.totalorder %v1286, %v391
  %vm1311 = vcmp.eq.s32.totalorder %v1287, %v391
  %vm1312 = vcmp.eq.s32.totalorder %v1288, %v391
  %vm1313 = vcmp.eq.s32.totalorder %v1289, %v391
  %vm1314 = vcmp.eq.s32.totalorder %v1290, %v391
  %vm1315 = vcmp.eq.s32.totalorder %v1291, %v391
  %vm1316 = vcmp.eq.s32.totalorder %v1292, %v391
  %vm1317 = vcmp.eq.s32.totalorder %v1293, %v391
  %vm1318 = vcmp.eq.s32.totalorder %v1294, %v391
  %vm1319 = vcmp.eq.s32.totalorder %v1295, %v391
  %vm1320 = vcmp.eq.s32.totalorder %v1296, %v391
  %vm1321 = vcmp.eq.s32.totalorder %v1297, %v391
  %vm1322 = vcmp.eq.s32.totalorder %v1298, %v391
  %vm1323 = vcmp.eq.s32.totalorder %v1299, %v391
  %vm1324 = vcmp.eq.s32.totalorder %v1300, %v391
  %vm1325 = vcmp.eq.s32.totalorder %v1301, %v391
  %vm1326 = vcmp.eq.s32.totalorder %v1302, %v391
  %vm1327 = vcmp.eq.s32.totalorder %v1303, %v391
  %vm1328 = vcmp.eq.s32.totalorder %v1304, %v391
  %v1329 = vsel %vm1305, 1, 0
  %v1330 = vsel %vm1306, 1, 0
  %v1331 = vsel %vm1307, 1, 0
  %v1332 = vsel %vm1308, 1, 0
  %v1333 = vsel %vm1309, 1, 0
  %v1334 = vsel %vm1310, 1, 0
  %v1335 = vsel %vm1311, 1, 0
  %v1336 = vsel %vm1312, 1, 0
  %v1337 = vsel %vm1313, 1, 0
  %v1338 = vsel %vm1314, 1, 0
  %v1339 = vsel %vm1315, 1, 0
  %v1340 = vsel %vm1316, 1, 0
  %v1341 = vsel %vm1317, 1, 0
  %v1342 = vsel %vm1318, 1, 0
  %v1343 = vsel %vm1319, 1, 0
  %v1344 = vsel %vm1320, 1, 0
  %v1345 = vsel %vm1321, 1, 0
  %v1346 = vsel %vm1322, 1, 0
  %v1347 = vsel %vm1323, 1, 0
  %v1348 = vsel %vm1324, 1, 0
  %v1349 = vsel %vm1325, 1, 0
  %v1350 = vsel %vm1326, 1, 0
  %v1351 = vsel %vm1327, 1, 0
  %v1352 = vsel %vm1328, 1, 0
  %v1353 = vcvt.s32.f32 %v1329
  %v1354 = vcvt.s32.f32 %v1330
  %v1355 = vcvt.s32.f32 %v1331
  %v1356 = vcvt.s32.f32 %v1332
  %v1357 = vcvt.s32.f32 %v1333
  %v1358 = vcvt.s32.f32 %v1334
  %v1359 = vcvt.s32.f32 %v1335
  %v1360 = vcvt.s32.f32 %v1336
  %v1361 = vcvt.s32.f32 %v1337
  %v1362 = vcvt.s32.f32 %v1338
  %v1363 = vcvt.s32.f32 %v1339
  %v1364 = vcvt.s32.f32 %v1340
  %v1365 = vcvt.s32.f32 %v1341
  %v1366 = vcvt.s32.f32 %v1342
  %v1367 = vcvt.s32.f32 %v1343
  %v1368 = vcvt.s32.f32 %v1344
  %v1369 = vcvt.s32.f32 %v1345
  %v1370 = vcvt.s32.f32 %v1346
  %v1371 = vcvt.s32.f32 %v1347
  %v1372 = vcvt.s32.f32 %v1348
  %v1373 = vcvt.s32.f32 %v1349
  %v1374 = vcvt.s32.f32 %v1350
  %v1375 = vcvt.s32.f32 %v1351
  %v1376 = vcvt.s32.f32 %v1352
  %vm1377 = vcmask 228352
  %v1378 = vsel %vm1377, 1.0, 0
  %vm1380 = vcmask 1043456
  %v1382 = vsel %vm1380, %v1269, 0
  %v1385 = vsel %vm1380, %v1270, 0
  %1387 = vmatprep.subr.mxu0 %v1264
  %1388 = vmatpush1.msra.mxu0 %v1263
  %1389 = vmatprep.subr.mxu0 %v1266
  %1390 = vmatpush1.msra.mxu0 %v1265
  %1391 = vmatprep.subr.mxu0 %v1268
  %1392 = vmatpush1.msra.mxu0 %v1267
  %1393 = vmatprep.subr.mxu0 %v1385
  %1394 = vmatpush1.msra.mxu0 %v1382
  %1395 = vmatprep.subr.mxu0 0.0
  %1396 = vmatpush1.msra.mxu0 0.0
  %1397 = vmatprep.subr.mxu0 0.0
  %1398 = vmatpush1.msra.mxu0 0.0
  %1399 = vmatprep.subr.mxu0 0.0
  %1400 = vmatpush1.msra.mxu0 0.0
  %1401 = vmatprep.subr.mxu0 0.0
  %1402 = vmatpush1.msra.mxu0 0.0
  %1403 = vmatprep.subr.mxu0 0.0
  %1404 = vmatpush1.msra.mxu0 0.0
  %1405 = vmatprep.subr.mxu0 0.0
  %1406 = vmatpush1.msra.mxu0 0.0
  %1407 = vmatprep.subr.mxu0 0.0
  %1408 = vmatpush1.msra.mxu0 0.0
  %1409 = vmatprep.subr.mxu0 0.0
  %1410 = vmatpush1.msra.mxu0 0.0
  %1411 = vmatprep.subr.mxu0 0.0
  %1412 = vmatpush1.msra.mxu0 0.0
  %1413 = vmatprep.subr.mxu0 0.0
  %1414 = vmatpush1.msra.mxu0 0.0
  %1415 = vmatprep.subr.mxu0 0.0
  %1416 = vmatpush1.msra.mxu0 0.0
  %1417 = vmatprep.subr.mxu0 0.0
  %1418 = vmatpush1.msra.mxu0 0.0
  %1419 = vmatprep.subr.mxu0 0.0
  %1420 = vmatpush1.msra.mxu0 0.0
  %1421 = vmatprep.subr.mxu0 0.0
  %1422 = vmatpush1.msra.mxu0 0.0
  %1423 = vmatprep.subr.mxu0 0.0
  %1424 = vmatpush1.msra.mxu0 0.0
  %1425 = vmatprep.subr.mxu0 0.0
  %1426 = vmatpush1.msra.mxu0 0.0
  %1427 = vmatprep.subr.mxu0 0.0
  %1428 = vmatpush1.msra.mxu0 0.0
  %1429 = vmatprep.subr.mxu0 0.0
  %1430 = vmatpush1.msra.mxu0 0.0
  %1431 = vmatprep.subr.mxu0 0.0
  %1432 = vmatpush1.msra.mxu0 0.0
  %1433 = vmatprep.subr.mxu0 0.0
  %1434 = vmatpush1.msra.mxu0 0.0
  %1435 = vmatprep.subr.mxu0 0.0
  %1436 = vmatpush1.msra.mxu0 0.0
  %1437 = vmatprep.subr.mxu0 0.0
  %1438 = vmatpush1.msra.mxu0 0.0
  %1439 = vmatprep.subr.mxu0 0.0
  %1440 = vmatpush1.msra.mxu0 0.0
  %1441 = vmatprep.subr.mxu0 0.0
  %1442 = vmatpush1.msra.mxu0 0.0
  %1443 = vmatprep.subr.mxu0 0.0
  %1444 = vmatpush1.msra.mxu0 0.0
  %1445 = vmatprep.subr.mxu0 0.0
  %1446 = vmatpush1.msra.mxu0 0.0
  %1447 = vmatprep.subr.mxu0 0.0
  %1448 = vmatpush1.msra.mxu0 0.0
  %1449 = vmatprep.subr.mxu0 0.0
  %1450 = vmatpush1.msra.mxu0 0.0
  %1451 = vmatprep.mubr.f32.mxu0 0.0
  %1452 = vmatmul.mubr.f32.gmra.mrb[0].mxu0 %v1378
  %v1453 = vpop.f32.mrb[0].mxu0
  %v1454 = vadd.f32 0.0, %v1453
  %v1455 = vpop.f32.mrb[0].mxu0
  %v1456 = vadd.f32 0.0, %v1455
  %1457 = vdwg.mxu0
  %v1459 = vsel %vm50, %v1456, 0
  %1461 = vmatprep.subr.mxu0 0.0
  %1462 = vmatpush1.msra.mxu0 %v1353
  %1463 = vmatprep.subr.mxu0 0.0
  %1464 = vmatpush1.msra.mxu0 %v1354
  %1465 = vmatprep.subr.mxu0 0.0
  %1466 = vmatpush1.msra.mxu0 %v1355
  %1467 = vmatprep.subr.mxu0 0.0
  %1468 = vmatpush1.msra.mxu0 %v1356
  %1469 = vmatprep.subr.mxu0 0.0
  %1470 = vmatpush1.msra.mxu0 %v1357
  %1471 = vmatprep.subr.mxu0 0.0
  %1472 = vmatpush1.msra.mxu0 %v1358
  %1473 = vmatprep.subr.mxu0 0.0
  %1474 = vmatpush1.msra.mxu0 %v1359
  %1475 = vmatprep.subr.mxu0 0.0
  %1476 = vmatpush1.msra.mxu0 %v1360
  %1477 = vmatprep.subr.mxu0 0.0
  %1478 = vmatpush1.msra.mxu0 %v1361
  %1479 = vmatprep.subr.mxu0 0.0
  %1480 = vmatpush1.msra.mxu0 %v1362
  %1481 = vmatprep.subr.mxu0 0.0
  %1482 = vmatpush1.msra.mxu0 %v1363
  %1483 = vmatprep.subr.mxu0 0.0
  %1484 = vmatpush1.msra.mxu0 %v1364
  %1485 = vmatprep.subr.mxu0 0.0
  %1486 = vmatpush1.msra.mxu0 %v1365
  %1487 = vmatprep.subr.mxu0 0.0
  %1488 = vmatpush1.msra.mxu0 %v1366
  %1489 = vmatprep.subr.mxu0 0.0
  %1490 = vmatpush1.msra.mxu0 %v1367
  %1491 = vmatprep.subr.mxu0 0.0
  %1492 = vmatpush1.msra.mxu0 %v1368
  %1493 = vmatprep.subr.mxu0 0.0
  %1494 = vmatpush1.msra.mxu0 %v1369
  %1495 = vmatprep.subr.mxu0 0.0
  %1496 = vmatpush1.msra.mxu0 %v1370
  %1497 = vmatprep.subr.mxu0 0.0
  %1498 = vmatpush1.msra.mxu0 %v1371
  %1499 = vmatprep.subr.mxu0 0.0
  %1500 = vmatpush1.msra.mxu0 %v1372
  %1501 = vmatprep.subr.mxu0 0.0
  %1502 = vmatpush1.msra.mxu0 %v1373
  %1503 = vmatprep.subr.mxu0 0.0
  %1504 = vmatpush1.msra.mxu0 %v1374
  %1505 = vmatprep.subr.mxu0 0.0
  %1506 = vmatpush1.msra.mxu0 %v1375
  %1507 = vmatprep.subr.mxu0 0.0
  %1508 = vmatpush1.msra.mxu0 %v1376
  %1509 = vmatprep.subr.mxu0 0.0
  %1510 = vmatpush1.msra.mxu0 0.0
  %1511 = vmatprep.subr.mxu0 0.0
  %1512 = vmatpush1.msra.mxu0 0.0
  %1513 = vmatprep.subr.mxu0 0.0
  %1514 = vmatpush1.msra.mxu0 0.0
  %1515 = vmatprep.subr.mxu0 0.0
  %1516 = vmatpush1.msra.mxu0 0.0
  %1517 = vmatprep.subr.mxu0 0.0
  %1518 = vmatpush1.msra.mxu0 0.0
  %1519 = vmatprep.subr.mxu0 0.0
  %1520 = vmatpush1.msra.mxu0 0.0
  %1521 = vmatprep.subr.mxu0 0.0
  %1522 = vmatpush1.msra.mxu0 0.0
  %1523 = vmatprep.subr.mxu0 0.0
  %1524 = vmatpush1.msra.mxu0 0.0
  %1525 = vmatprep.mubr.f32.mxu0 %v1459
  %1526 = vmatmul.mubr.f32.gmra.mrb[0].mxu0 %v1454
  %v1527 = vpop.f32.mrb[0].mxu0
  %v1528 = vadd.f32 0.0, %v1527
  %v1529 = vpop.f32.mrb[0].mxu0
  %1530 = vdwg.mxu0
  %v1531 = vmul.f32 %v1263, %v1263
  %v1532 = vmul.f32 %v1264, %v1264
  %v1533 = vmul.f32 %v1265, %v1265
  %v1534 = vmul.f32 %v1266, %v1266
  %v1535 = vmul.f32 %v1267, %v1267
  %v1536 = vmul.f32 %v1268, %v1268
  %v1537 = vmul.f32 %v1269, %v1269
  %v1538 = vmul.f32 %v1270, %v1270
  %v1540 = vsel %vm1380, %v1537, 0
  %v1543 = vsel %vm1380, %v1538, 0
  %1545 = vmatprep.subr.mxu0 %v1532
  %1546 = vmatpush1.msra.mxu0 %v1531
  %1547 = vmatprep.subr.mxu0 %v1534
  %1548 = vmatpush1.msra.mxu0 %v1533
  %1549 = vmatprep.subr.mxu0 %v1536
  %1550 = vmatpush1.msra.mxu0 %v1535
  %1551 = vmatprep.subr.mxu0 %v1543
  %1552 = vmatpush1.msra.mxu0 %v1540
  %1553 = vmatprep.subr.mxu0 0.0
  %1554 = vmatpush1.msra.mxu0 0.0
  %1555 = vmatprep.subr.mxu0 0.0
  %1556 = vmatpush1.msra.mxu0 0.0
  %1557 = vmatprep.subr.mxu0 0.0
  %1558 = vmatpush1.msra.mxu0 0.0
  %1559 = vmatprep.subr.mxu0 0.0
  %1560 = vmatpush1.msra.mxu0 0.0
  %1561 = vmatprep.subr.mxu0 0.0
  %1562 = vmatpush1.msra.mxu0 0.0
  %1563 = vmatprep.subr.mxu0 0.0
  %1564 = vmatpush1.msra.mxu0 0.0
  %1565 = vmatprep.subr.mxu0 0.0
  %1566 = vmatpush1.msra.mxu0 0.0
  %1567 = vmatprep.subr.mxu0 0.0
  %1568 = vmatpush1.msra.mxu0 0.0
  %1569 = vmatprep.subr.mxu0 0.0
  %1570 = vmatpush1.msra.mxu0 0.0
  %1571 = vmatprep.subr.mxu0 0.0
  %1572 = vmatpush1.msra.mxu0 0.0
  %1573 = vmatprep.subr.mxu0 0.0
  %1574 = vmatpush1.msra.mxu0 0.0
  %1575 = vmatprep.subr.mxu0 0.0
  %1576 = vmatpush1.msra.mxu0 0.0
  %1577 = vmatprep.subr.mxu0 0.0
  %1578 = vmatpush1.msra.mxu0 0.0
  %1579 = vmatprep.subr.mxu0 0.0
  %1580 = vmatpush1.msra.mxu0 0.0
  %1581 = vmatprep.subr.mxu0 0.0
  %1582 = vmatpush1.msra.mxu0 0.0
  %1583 = vmatprep.subr.mxu0 0.0
  %1584 = vmatpush1.msra.mxu0 0.0
  %1585 = vmatprep.subr.mxu0 0.0
  %1586 = vmatpush1.msra.mxu0 0.0
  %1587 = vmatprep.subr.mxu0 0.0
  %1588 = vmatpush1.msra.mxu0 0.0
  %1589 = vmatprep.subr.mxu0 0.0
  %1590 = vmatpush1.msra.mxu0 0.0
  %1591 = vmatprep.subr.mxu0 0.0
  %1592 = vmatpush1.msra.mxu0 0.0
  %1593 = vmatprep.subr.mxu0 0.0
  %1594 = vmatpush1.msra.mxu0 0.0
  %1595 = vmatprep.subr.mxu0 0.0
  %1596 = vmatpush1.msra.mxu0 0.0
  %1597 = vmatprep.subr.mxu0 0.0
  %1598 = vmatpush1.msra.mxu0 0.0
  %1599 = vmatprep.subr.mxu0 0.0
  %1600 = vmatpush1.msra.mxu0 0.0
  %1601 = vmatprep.subr.mxu0 0.0
  %1602 = vmatpush1.msra.mxu0 0.0
  %1603 = vmatprep.subr.mxu0 0.0
  %1604 = vmatpush1.msra.mxu0 0.0
  %1605 = vmatprep.subr.mxu0 0.0
  %1606 = vmatpush1.msra.mxu0 0.0
  %1607 = vmatprep.subr.mxu0 0.0
  %1608 = vmatpush1.msra.mxu0 0.0
  %1609 = vmatprep.mubr.f32.mxu0 0.0
  %1610 = vmatmul.mubr.f32.gmra.mrb[0].mxu0 %v1378
  %v1611 = vpop.f32.mrb[0].mxu0
  %v1612 = vadd.f32 0.0, %v1611
  %v1613 = vpop.f32.mrb[0].mxu0
  %v1614 = vadd.f32 0.0, %v1613
  %1615 = vdwg.mxu0
  %v1617 = vsel %vm50, %v1614, 0
  %1619 = vmatprep.subr.mxu0 0.0
  %1620 = vmatpush1.msra.mxu0 %v1353
  %1621 = vmatprep.subr.mxu0 0.0
  %1622 = vmatpush1.msra.mxu0 %v1354
  %1623 = vmatprep.subr.mxu0 0.0
  %1624 = vmatpush1.msra.mxu0 %v1355
  %1625 = vmatprep.subr.mxu0 0.0
  %1626 = vmatpush1.msra.mxu0 %v1356
  %1627 = vmatprep.subr.mxu0 0.0
  %1628 = vmatpush1.msra.mxu0 %v1357
  %1629 = vmatprep.subr.mxu0 0.0
  %1630 = vmatpush1.msra.mxu0 %v1358
  %1631 = vmatprep.subr.mxu0 0.0
  %1632 = vmatpush1.msra.mxu0 %v1359
  %1633 = vmatprep.subr.mxu0 0.0
  %1634 = vmatpush1.msra.mxu0 %v1360
  %1635 = vmatprep.subr.mxu0 0.0
  %1636 = vmatpush1.msra.mxu0 %v1361
  %1637 = vmatprep.subr.mxu0 0.0
  %1638 = vmatpush1.msra.mxu0 %v1362
  %1639 = vmatprep.subr.mxu0 0.0
  %1640 = vmatpush1.msra.mxu0 %v1363
  %1641 = vmatprep.subr.mxu0 0.0
  %1642 = vmatpush1.msra.mxu0 %v1364
  %1643 = vmatprep.subr.mxu0 0.0
  %1644 = vmatpush1.msra.mxu0 %v1365
  %1645 = vmatprep.subr.mxu0 0.0
  %1646 = vmatpush1.msra.mxu0 %v1366
  %1647 = vmatprep.subr.mxu0 0.0
  %1648 = vmatpush1.msra.mxu0 %v1367
  %1649 = vmatprep.subr.mxu0 0.0
  %1650 = vmatpush1.msra.mxu0 %v1368
  %1651 = vmatprep.subr.mxu0 0.0
  %1652 = vmatpush1.msra.mxu0 %v1369
  %1653 = vmatprep.subr.mxu0 0.0
  %1654 = vmatpush1.msra.mxu0 %v1370
  %1655 = vmatprep.subr.mxu0 0.0
  %1656 = vmatpush1.msra.mxu0 %v1371
  %1657 = vmatprep.subr.mxu0 0.0
  %1658 = vmatpush1.msra.mxu0 %v1372
  %1659 = vmatprep.subr.mxu0 0.0
  %1660 = vmatpush1.msra.mxu0 %v1373
  %1661 = vmatprep.subr.mxu0 0.0
  %1662 = vmatpush1.msra.mxu0 %v1374
  %1663 = vmatprep.subr.mxu0 0.0
  %1664 = vmatpush1.msra.mxu0 %v1375
  %1665 = vmatprep.subr.mxu0 0.0
  %1666 = vmatpush1.msra.mxu0 %v1376
  %1667 = vmatprep.subr.mxu0 0.0
  %1668 = vmatpush1.msra.mxu0 0.0
  %1669 = vmatprep.subr.mxu0 0.0
  %1670 = vmatpush1.msra.mxu0 0.0
  %1671 = vmatprep.subr.mxu0 0.0
  %1672 = vmatpush1.msra.mxu0 0.0
  %1673 = vmatprep.subr.mxu0 0.0
  %1674 = vmatpush1.msra.mxu0 0.0
  %1675 = vmatprep.subr.mxu0 0.0
  %1676 = vmatpush1.msra.mxu0 0.0
  %1677 = vmatprep.subr.mxu0 0.0
  %1678 = vmatpush1.msra.mxu0 0.0
  %1679 = vmatprep.subr.mxu0 0.0
  %1680 = vmatpush1.msra.mxu0 0.0
  %1681 = vmatprep.subr.mxu0 0.0
  %1682 = vmatpush1.msra.mxu0 0.0
  %1683 = vmatprep.mubr.f32.mxu0 %v1617
  %1684 = vmatmul.mubr.f32.gmra.mrb[0].mxu0 %v1612
  %v1685 = vpop.f32.mrb[0].mxu0
  %v1686 = vadd.f32 0.0, %v1685
  %v1687 = vpop.f32.mrb[0].mxu0
  %1688 = vdwg.mxu0
  %v1689 = vmul.f32 %v1528, 0.0034722222
  %v1690 = vmul.f32 %v1686, 0.0034722222
  %v1691 = vmul.f32 %v1689, %v1689
  %v1692 = vsub.f32 %v1690, %v1691
  %v1693 = vmax.f32 %v1692, 0.0
  %v1694 = vld [vmem:[%s3 + $0x1] sm:$0x1]
  %v1695 = vld [vmem:[%s3 + $0x2] sm:$0x1]
  %v1696 = vadd.f32 %v1693, 1e-05
  %v1697 = vrsqrt.pop %v1696
  %v1698 = vmul.f32 %v1694, %v1697
  %v1699 = vmul.f32 %v1689, %v1698
  %v1700 = vsub.f32 %v1695, %v1699
  %v1701 = vadd.s32 %v391, 128
  %v1702 = vand.u32 %v391, 15
  %v1703 = vand.u32 %v1701, 15
  %vm1704 = vcmp.eq.s32.totalorder %v1702, %v352
  %vm1705 = vcmp.eq.s32.totalorder %v1703, %v352
  %vm1706 = vcmp.eq.s32.totalorder %v1702, %v353
  %vm1707 = vcmp.eq.s32.totalorder %v1703, %v353
  %v1708 = vsel %vm1704, 1, 0
  %v1709 = vsel %vm1705, 1, 0
  %v1710 = vsel %vm1706, 1, 0
  %v1711 = vsel %vm1707, 1, 0
  %v1712 = vcvt.s32.f32 %v1708
  %v1713 = vcvt.s32.f32 %v1709
  %v1714 = vcvt.s32.f32 %v1710
  %v1715 = vcvt.s32.f32 %v1711
  %vm1716 = vcmask 130048
  %v1718 = vsel %vm1716, %v1698, 0
  %1720 = vmatprep.subr.mxu0 %v1713
  %1721 = vmatpush1.msra.mxu0 %v1712
  %1722 = vmatprep.subr.mxu0 %v1715
  %1723 = vmatpush1.msra.mxu0 %v1714
  %1724 = vmatprep.subr.mxu0 0.0
  %1725 = vmatpush1.msra.mxu0 0.0
  %1726 = vmatprep.subr.mxu0 0.0
  %1727 = vmatpush1.msra.mxu0 0.0
  %1728 = vmatprep.subr.mxu0 0.0
  %1729 = vmatpush1.msra.mxu0 0.0
  %1730 = vmatprep.subr.mxu0 0.0
  %1731 = vmatpush1.msra.mxu0 0.0
  %1732 = vmatprep.subr.mxu0 0.0
  %1733 = vmatpush1.msra.mxu0 0.0
  %1734 = vmatprep.subr.mxu0 0.0
  %1735 = vmatpush1.msra.mxu0 0.0
  %1736 = vmatprep.subr.mxu0 0.0
  %1737 = vmatpush1.msra.mxu0 0.0
  %1738 = vmatprep.subr.mxu0 0.0
  %1739 = vmatpush1.msra.mxu0 0.0
  %1740 = vmatprep.subr.mxu0 0.0
  %1741 = vmatpush1.msra.mxu0 0.0
  %1742 = vmatprep.subr.mxu0 0.0
  %1743 = vmatpush1.msra.mxu0 0.0
  %1744 = vmatprep.subr.mxu0 0.0
  %1745 = vmatpush1.msra.mxu0 0.0
  %1746 = vmatprep.subr.mxu0 0.0
  %1747 = vmatpush1.msra.mxu0 0.0
  %1748 = vmatprep.subr.mxu0 0.0
  %1749 = vmatpush1.msra.mxu0 0.0
  %1750 = vmatprep.subr.mxu0 0.0
  %1751 = vmatpush1.msra.mxu0 0.0
  %1752 = vmatprep.subr.mxu0 0.0
  %1753 = vmatpush1.msra.mxu0 0.0
  %1754 = vmatprep.subr.mxu0 0.0
  %1755 = vmatpush1.msra.mxu0 0.0
  %1756 = vmatprep.subr.mxu0 0.0
  %1757 = vmatpush1.msra.mxu0 0.0
  %1758 = vmatprep.subr.mxu0 0.0
  %1759 = vmatpush1.msra.mxu0 0.0
  %1760 = vmatprep.subr.mxu0 0.0
  %1761 = vmatpush1.msra.mxu0 0.0
  %1762 = vmatprep.subr.mxu0 0.0
  %1763 = vmatpush1.msra.mxu0 0.0
  %1764 = vmatprep.subr.mxu0 0.0
  %1765 = vmatpush1.msra.mxu0 0.0
  %1766 = vmatprep.subr.mxu0 0.0
  %1767 = vmatpush1.msra.mxu0 0.0
  %1768 = vmatprep.subr.mxu0 0.0
  %1769 = vmatpush1.msra.mxu0 0.0
  %1770 = vmatprep.subr.mxu0 0.0
  %1771 = vmatpush1.msra.mxu0 0.0
  %1772 = vmatprep.subr.mxu0 0.0
  %1773 = vmatpush1.msra.mxu0 0.0
  %1774 = vmatprep.subr.mxu0 0.0
  %1775 = vmatpush1.msra.mxu0 0.0
  %1776 = vmatprep.subr.mxu0 0.0
  %1777 = vmatpush1.msra.mxu0 0.0
  %1778 = vmatprep.subr.mxu0 0.0
  %1779 = vmatpush1.msra.mxu0 0.0
  %1780 = vmatprep.subr.mxu0 0.0
  %1781 = vmatpush1.msra.mxu0 0.0
  %1782 = vmatprep.subr.mxu0 0.0
  %1783 = vmatpush1.msra.mxu0 0.0
  %1784 = vmatprep.mubr.f32.mxu0 0.0
  %1785 = vmatmul.mubr.f32.gmra.mrb[0].mxu0 %v1718
  %v1786 = vpop.f32.mrb[0].mxu0
  %v1787 = vadd.f32 0.0, %v1786
  %v1788 = vpop.f32.mrb[0].mxu0
  %v1789 = vadd.f32 0.0, %v1788
  %1790 = vdwg.mxu0
  %v1791 = vlaneseq
  %v1792 = vshrl.u32 %v1791, 7
  %v1793 = vsub.s32 0, %v1792
  %v1794 = vrot.slane %v1787, %v1793
  %v1795 = vlaneseq
  %v1796 = vshrl.u32 %v1795, 7
  %v1797 = vsub.s32 0, %v1796
  %v1798 = vrot.slane %v1789, %v1797
  %v1799 = vmul.f32 %v1239, %v1794
  %v1800 = vmul.f32 %v1240, %v1798
  %v1801 = vmul.f32 %v1241, %v1794
  %v1802 = vmul.f32 %v1242, %v1798
  %v1803 = vmul.f32 %v1243, %v1794
  %v1804 = vmul.f32 %v1244, %v1798
  %v1805 = vmul.f32 %v1245, %v1794
  %v1806 = vmul.f32 %v1246, %v1798
  %v1808 = vsel %vm1716, %v1700, 0
  %1810 = vmatprep.subr.mxu0 %v1713
  %1811 = vmatpush1.msra.mxu0 %v1712
  %1812 = vmatprep.subr.mxu0 %v1715
  %1813 = vmatpush1.msra.mxu0 %v1714
  %1814 = vmatprep.subr.mxu0 0.0
  %1815 = vmatpush1.msra.mxu0 0.0
  %1816 = vmatprep.subr.mxu0 0.0
  %1817 = vmatpush1.msra.mxu0 0.0
  %1818 = vmatprep.subr.mxu0 0.0
  %1819 = vmatpush1.msra.mxu0 0.0
  %1820 = vmatprep.subr.mxu0 0.0
  %1821 = vmatpush1.msra.mxu0 0.0
  %1822 = vmatprep.subr.mxu0 0.0
  %1823 = vmatpush1.msra.mxu0 0.0
  %1824 = vmatprep.subr.mxu0 0.0
  %1825 = vmatpush1.msra.mxu0 0.0
  %1826 = vmatprep.subr.mxu0 0.0
  %1827 = vmatpush1.msra.mxu0 0.0
  %1828 = vmatprep.subr.mxu0 0.0
  %1829 = vmatpush1.msra.mxu0 0.0
  %1830 = vmatprep.subr.mxu0 0.0
  %1831 = vmatpush1.msra.mxu0 0.0
  %1832 = vmatprep.subr.mxu0 0.0
  %1833 = vmatpush1.msra.mxu0 0.0
  %1834 = vmatprep.subr.mxu0 0.0
  %1835 = vmatpush1.msra.mxu0 0.0
  %1836 = vmatprep.subr.mxu0 0.0
  %1837 = vmatpush1.msra.mxu0 0.0
  %1838 = vmatprep.subr.mxu0 0.0
  %1839 = vmatpush1.msra.mxu0 0.0
  %1840 = vmatprep.subr.mxu0 0.0
  %1841 = vmatpush1.msra.mxu0 0.0
  %1842 = vmatprep.subr.mxu0 0.0
  %1843 = vmatpush1.msra.mxu0 0.0
  %1844 = vmatprep.subr.mxu0 0.0
  %1845 = vmatpush1.msra.mxu0 0.0
  %1846 = vmatprep.subr.mxu0 0.0
  %1847 = vmatpush1.msra.mxu0 0.0
  %1848 = vmatprep.subr.mxu0 0.0
  %1849 = vmatpush1.msra.mxu0 0.0
  %1850 = vmatprep.subr.mxu0 0.0
  %1851 = vmatpush1.msra.mxu0 0.0
  %1852 = vmatprep.subr.mxu0 0.0
  %1853 = vmatpush1.msra.mxu0 0.0
  %1854 = vmatprep.subr.mxu0 0.0
  %1855 = vmatpush1.msra.mxu0 0.0
  %1856 = vmatprep.subr.mxu0 0.0
  %1857 = vmatpush1.msra.mxu0 0.0
  %1858 = vmatprep.subr.mxu0 0.0
  %1859 = vmatpush1.msra.mxu0 0.0
  %1860 = vmatprep.subr.mxu0 0.0
  %1861 = vmatpush1.msra.mxu0 0.0
  %1862 = vmatprep.subr.mxu0 0.0
  %1863 = vmatpush1.msra.mxu0 0.0
  %1864 = vmatprep.subr.mxu0 0.0
  %1865 = vmatpush1.msra.mxu0 0.0
  %1866 = vmatprep.subr.mxu0 0.0
  %1867 = vmatpush1.msra.mxu0 0.0
  %1868 = vmatprep.subr.mxu0 0.0
  %1869 = vmatpush1.msra.mxu0 0.0
  %1870 = vmatprep.subr.mxu0 0.0
  %1871 = vmatpush1.msra.mxu0 0.0
  %1872 = vmatprep.subr.mxu0 0.0
  %1873 = vmatpush1.msra.mxu0 0.0
  %1874 = vmatprep.mubr.f32.mxu0 0.0
  %1875 = vmatmul.mubr.f32.gmra.mrb[0].mxu0 %v1808
  %v1876 = vpop.f32.mrb[0].mxu0
  %v1877 = vadd.f32 0.0, %v1876
  %v1878 = vpop.f32.mrb[0].mxu0
  %v1879 = vadd.f32 0.0, %v1878
  %1880 = vdwg.mxu0
  %v1881 = vlaneseq
  %v1882 = vshrl.u32 %v1881, 7
  %v1883 = vsub.s32 0, %v1882
  %v1884 = vrot.slane %v1877, %v1883
  %v1885 = vlaneseq
  %v1886 = vshrl.u32 %v1885, 7
  %v1887 = vsub.s32 0, %v1886
  %v1888 = vrot.slane %v1879, %v1887
  %v1889 = vadd.f32 %v1799, %v1884
  %v1890 = vadd.f32 %v1800, %v1888
  %v1891 = vadd.f32 %v1801, %v1884
  %v1892 = vadd.f32 %v1802, %v1888
  %v1893 = vadd.f32 %v1803, %v1884
  %v1894 = vadd.f32 %v1804, %v1888
  %v1895 = vadd.f32 %v1805, %v1884
  %v1896 = vadd.f32 %v1806, %v1888
  %1897 = vst [vmem:[%s4] sm:$0xff] %v1889
  %1898 = vst.msk [vmem:[%s4 + $0x8] sm:$0xff] %vm50, %v1890
  %1899 = vst [vmem:[%s4 + $0x10] sm:$0xf] %v1891
  %vm1900 = vcmask 519168
  %1901 = vst.msk [vmem:[%s4 + $0x18] sm:$0xf] %vm1900, %v1892
  %s1902 = scalar_lea.vmem %s4, 32
  %1903 = vst [vmem:[%s1902] sm:$0xff] %v1893
  %1904 = vst.msk [vmem:[%s1902 + $0x8] sm:$0xff] %vm50, %v1894
  %1905 = vst [vmem:[%s1902 + $0x10] sm:$0xf] %v1895
  %1906 = vst.msk [vmem:[%s1902 + $0x18] sm:$0xf] %vm1900, %v1896
  // Predicated region
  $region18: #{model_forward.1} parent=0 // pred_check
    _
  $region19: #{model_forward.1} parent=0 // pred_check_branch
    %1908 = sbr.rel (0) target = $region21
  $region20: #{model_forward.1} parent=0 // pred_region
    _
  $region21: #{model_forward.1} parent=0 // pred_fallthru
    _
  // Predicated region
  $region22: #{model_forward.1} parent=0 // pred_check
    _
  $region23: #{model_forward.1} parent=0 // pred_check_branch
    %1910 = sbr.rel (0) target = $region25
  $region24: #{model_forward.1} parent=0 // pred_region
    _
  $region25: #{model_forward.1} parent=0 // pred_fallthru
    _

</llo_original>
